<compile_context>
chip_gen: v5e
topology: v5e:2x2
jax: 0.10.0
libtpu: 0.0.40
codegen_flags: <defaults>
</compile_context>

<pallas_src>
import jax
import jax.numpy as jnp
from jax.experimental import pallas as pl
from jax.experimental.pallas import tpu as pltpu

KH = KW = 3  # fixed 3x3 kernel, stride=1, padding=1


def relu_conv3x3_kernel(x_ref, w_ref, b_ref, o_ref):
    """One (H-tile, Cout-block) step of ReLU + 3x3 same-conv.

    x_ref: (Hp, Wp, Cin)   bf16 zero-padded input (constant index -> resident)
    w_ref: (9, Cin, TCO)   bf16 weight block for this Cout slice (streamed)
    b_ref: (1, TCO)        f32 bias slice
    o_ref: (TH, Wp, TCO)   output tile (padded width; cropped in the wrapper)
    """
    th, wp, tco = o_ref.shape
    cin = x_ref.shape[-1]
    rows = th * wp

    # Slice this tile's halo: TH+2 needed rows + 1 slack row so every tap
    # slice below stays in bounds.  ReLU once, flatten once (Wp is a multiple
    # of 8, so the reshape is layout-preserving).  ReLU(0)=0, so ReLU-after-pad
    # equals pad-after-ReLU.
    h0 = pl.program_id(2) * th
    xt = x_ref[pl.ds(h0, th + 3), :, :]
    xt = jnp.maximum(xt, 0).reshape((th + 3) * wp, cin)

    # Accumulate in a local f32 value (no VMEM scratch round-trips), seeded
    # with the bias.
    acc = jnp.broadcast_to(b_ref[...], (rows, tco)).astype(jnp.float32)

    # 9 MXU dots.  The kw shift (sublane offset 0/1/2) is applied once per kw;
    # the kh offsets are multiples of Wp (multiple of 8) -> aligned, free
    # slices feeding the MXU directly.
    for kw in range(KW):
        xk = xt[kw:kw + (th + 2) * wp, :]
        for kh in range(KH):
            patch = xk[kh * wp:kh * wp + rows, :]
            acc = acc + jnp.dot(patch, w_ref[kh * KW + kw],
                                preferred_element_type=jnp.float32)

    o_ref[...] = acc.reshape(th, wp, tco).astype(o_ref.dtype)


def _round_up(x, m):
    return (x + m - 1) // m * m


def _pick_tile_h(h, max_th=7):
    """Largest divisor of h that is <= max_th (TH=7 for H=28 -> 4 H tiles)."""
    for th in range(min(h, max_th), 0, -1):
        if h % th == 0:
            return th
    return h


def relu_conv2d(x_nchw, w_oihw, b, *, tile_h=None, tile_co=None):
    """PyTorch-semantics ReLU + Conv2d(Cin, Cout, 3, stride=1, padding=1).

    Note: MXU operands are bf16 with f32 accumulation (not f32-exact conv).
    """
    n, cin, h, w = x_nchw.shape
    cout = w_oihw.shape[0]

    if tile_h is None:
        tile_h = _pick_tile_h(h)
    assert h % tile_h == 0
    n_h = h // tile_h

    if tile_co is None:
        if cout % 256 == 0:
            tile_co = 256            # 2x256 blocks for the 512-channel module
        elif cout % 128 == 0:
            tile_co = 128
        else:
            tile_co = cout
    assert cout % tile_co == 0
    n_co = cout // tile_co

    wp = _round_up(w + 2, 8)         # sublane-aligned padded width (30 -> 32)
    hp = h + 3                       # 1 top pad + h + 1 bottom pad + 1 slack

    # Boundary glue: NCHW -> NHWC, zero pad, bf16 operands for the MXU.
    x_nhwc = jnp.transpose(x_nchw, (0, 2, 3, 1))
    x_pad = jnp.pad(
        x_nhwc, ((0, 0), (1, 2), (1, wp - w - 1), (0, 0))).astype(jnp.bfloat16)
    w_k = jnp.transpose(w_oihw, (2, 3, 1, 0)).reshape(KH * KW, cin, cout)
    w_k = w_k.astype(jnp.bfloat16)
    b2 = b.reshape(1, cout).astype(jnp.float32)

    out_pad = pl.pallas_call(
        relu_conv3x3_kernel,
        out_shape=jax.ShapeDtypeStruct((n, h, wp, cout), x_nchw.dtype),
        grid=(n, n_co, n_h),         # H tiles innermost -> next weight block's
                                     # DMA overlaps the last H tiles of this one
        in_specs=[
            # Padded input: block index constant in (co, h) -> DMA'd once,
            # stays VMEM-resident across all grid steps of an image.
            pl.BlockSpec((None, hp, wp, cin), lambda b_, co, i: (b_, 0, 0, 0)),
            # Weights/bias: streamed per Cout block (double-buffered).
            pl.BlockSpec((KH * KW, cin, tile_co), lambda b_, co, i: (0, 0, co)),
            pl.BlockSpec((1, tile_co), lambda b_, co, i: (0, co)),
        ],
        # Lane-dense (Cout-last) output tile; full padded width -> unmasked vst.
        out_specs=pl.BlockSpec((None, tile_h, wp, tile_co),
                               lambda b_, co, i: (b_, i, 0, co)),
        compiler_params=pltpu.CompilerParams(
            dimension_semantics=("arbitrary", "parallel", "parallel"),
            vmem_limit_bytes=32 * 1024 * 1024,   # ~9 MB footprint @512ch + headroom
        ),
    )(x_pad, w_k, b2)

    # Crop the junk columns; XLA fuses this into the NHWC -> NCHW transpose.
    return jnp.transpose(out_pad[:, :, :w, :], (0, 3, 1, 2))


if __name__ == "__main__":
    # Small shapes consistent with the module (scaled down from [1,512,28,28]);
    # channels kept at 128 so the lane axis / MXU stay full-width.
    N, C, H, W = 1, 128, 16, 16
    key = jax.random.PRNGKey(0)
    kx, kw_, kb = jax.random.split(key, 3)

    x = jax.random.normal(kx, (N, C, H, W), dtype=jnp.float32)
    wgt = jax.random.normal(kw_, (C, C, KH, KW), dtype=jnp.float32) * 0.05
    bias = jax.random.normal(kb, (C,), dtype=jnp.float32) * 0.05

    out = relu_conv2d(x, wgt, bias)
    out = jax.block_until_ready(out)

    # Reference: f32 XLA conv of ReLU(x).  The kernel feeds the MXU bf16
    # operands (f32 accumulation), so the tolerance is loosened accordingly.
    ref = jax.lax.conv_general_dilated(
        jnp.maximum(x, 0.0), wgt,
        window_strides=(1, 1), padding=((1, 1), (1, 1)),
        dimension_numbers=("NCHW", "OIHW", "NCHW"),
    ) + bias.reshape(1, C, 1, 1)

    assert out.shape == (N, C, H, W)
    err = float(jnp.max(jnp.abs(out - ref)))
    assert jnp.allclose(out, ref, atol=5e-2, rtol=5e-2), err

    print("KERNEL_OK")
</pallas_src>

<mosaic_0001>
module attributes {stable_mosaic.version = 11 : i64} {
  func.func @relu_conv3x3_kernel(%arg0: i32, %arg1: i32, %arg2: i32, %arg3: memref<1x19x24x128xbf16, #tpu.memory_space<vmem>>, %arg4: memref<9x128x128xbf16, #tpu.memory_space<vmem>>, %arg5: memref<1x128xf32, #tpu.memory_space<vmem>>, %arg6: memref<1x4x24x128xf32, #tpu.memory_space<vmem>>) attributes {dimension_semantics = [#tpu.dimension_semantics<arbitrary>, #tpu.dimension_semantics<parallel>, #tpu.dimension_semantics<parallel>], iteration_bounds = array<i64: 1, 1, 4>, scalar_prefetch = 0 : i64, scratch_operands = 0 : i64, tpu.core_type = #tpu.core_type<tc>, window_params = [{transform_indices = @transform_0, window_bounds = array<i64: 1, 19, 24, 128>}, {transform_indices = @transform_1, window_bounds = array<i64: 9, 128, 128>}, {transform_indices = @transform_2, window_bounds = array<i64: 1, 128>}, {transform_indices = @transform_3, window_bounds = array<i64: 1, 4, 24, 128>}]} {
    %c4_i32 = arith.constant 4 : i32
    %0 = arith.muli %arg2, %c4_i32 : i32
    %c0 = arith.constant 0 : index
    %1 = arith.index_cast %0 : i32 to index
    %c0_0 = arith.constant 0 : index
    %c0_1 = arith.constant 0 : index
    %2 = vector.load %arg3[%c0, %1, %c0_0, %c0_1] : memref<1x19x24x128xbf16, #tpu.memory_space<vmem>>, vector<1x7x24x128xbf16>
    %3 = vector.shape_cast %2 : vector<1x7x24x128xbf16> to vector<7x24x128xbf16>
    %cst = arith.constant 0.000000e+00 : bf16
    %4 = vector.broadcast %cst : bf16 to vector<7x24x128xbf16>
    %5 = arith.maximumf %3, %4 : vector<7x24x128xbf16>
    %6 = vector.shape_cast %5 : vector<7x24x128xbf16> to vector<168x128xbf16>
    %c0_2 = arith.constant 0 : index
    %c0_3 = arith.constant 0 : index
    %7 = vector.load %arg5[%c0_2, %c0_3] : memref<1x128xf32, #tpu.memory_space<vmem>>, vector<1x128xf32>
    %8 = vector.shape_cast %7 : vector<1x128xf32> to vector<1x128xf32>
    %9 = vector.broadcast %8 : vector<1x128xf32> to vector<96x128xf32>
    %10 = vector.extract_strided_slice %6 {offsets = [0, 0], sizes = [144, 128], strides = [1, 1]} : vector<168x128xbf16> to vector<144x128xbf16>
    %11 = vector.extract_strided_slice %10 {offsets = [0, 0], sizes = [96, 128], strides = [1, 1]} : vector<144x128xbf16> to vector<96x128xbf16>
    %c0_4 = arith.constant 0 : index
    %c0_5 = arith.constant 0 : index
    %c0_6 = arith.constant 0 : index
    %12 = vector.load %arg4[%c0_4, %c0_5, %c0_6] : memref<9x128x128xbf16, #tpu.memory_space<vmem>>, vector<1x128x128xbf16>
    %13 = vector.shape_cast %12 : vector<1x128x128xbf16> to vector<128x128xbf16>
    %cst_7 = arith.constant dense<0.000000e+00> : vector<96x128xf32>
    %14 = tpu.matmul %11, %13, %cst_7 {dimension_numbers = #tpu.dot_dimension_numbers<[1], [0], [0], [1], [0, 0, 1, 1], [], []>} : vector<96x128xbf16>, vector<128x128xbf16>, vector<96x128xf32> -> vector<96x128xf32>
    %15 = arith.addf %9, %14 : vector<96x128xf32>
    %16 = vector.extract_strided_slice %10 {offsets = [24, 0], sizes = [96, 128], strides = [1, 1]} : vector<144x128xbf16> to vector<96x128xbf16>
    %c3 = arith.constant 3 : index
    %c0_8 = arith.constant 0 : index
    %c0_9 = arith.constant 0 : index
    %17 = vector.load %arg4[%c3, %c0_8, %c0_9] : memref<9x128x128xbf16, #tpu.memory_space<vmem>>, vector<1x128x128xbf16>
    %18 = vector.shape_cast %17 : vector<1x128x128xbf16> to vector<128x128xbf16>
    %cst_10 = arith.constant dense<0.000000e+00> : vector<96x128xf32>
    %19 = tpu.matmul %16, %18, %cst_10 {dimension_numbers = #tpu.dot_dimension_numbers<[1], [0], [0], [1], [0, 0, 1, 1], [], []>} : vector<96x128xbf16>, vector<128x128xbf16>, vector<96x128xf32> -> vector<96x128xf32>
    %20 = arith.addf %15, %19 : vector<96x128xf32>
    %21 = vector.extract_strided_slice %10 {offsets = [48, 0], sizes = [96, 128], strides = [1, 1]} : vector<144x128xbf16> to vector<96x128xbf16>
    %c6 = arith.constant 6 : index
    %c0_11 = arith.constant 0 : index
    %c0_12 = arith.constant 0 : index
    %22 = vector.load %arg4[%c6, %c0_11, %c0_12] : memref<9x128x128xbf16, #tpu.memory_space<vmem>>, vector<1x128x128xbf16>
    %23 = vector.shape_cast %22 : vector<1x128x128xbf16> to vector<128x128xbf16>
    %cst_13 = arith.constant dense<0.000000e+00> : vector<96x128xf32>
    %24 = tpu.matmul %21, %23, %cst_13 {dimension_numbers = #tpu.dot_dimension_numbers<[1], [0], [0], [1], [0, 0, 1, 1], [], []>} : vector<96x128xbf16>, vector<128x128xbf16>, vector<96x128xf32> -> vector<96x128xf32>
    %25 = arith.addf %20, %24 : vector<96x128xf32>
    %26 = vector.extract_strided_slice %6 {offsets = [1, 0], sizes = [144, 128], strides = [1, 1]} : vector<168x128xbf16> to vector<144x128xbf16>
    %27 = vector.extract_strided_slice %26 {offsets = [0, 0], sizes = [96, 128], strides = [1, 1]} : vector<144x128xbf16> to vector<96x128xbf16>
    %c1 = arith.constant 1 : index
    %c0_14 = arith.constant 0 : index
    %c0_15 = arith.constant 0 : index
    %28 = vector.load %arg4[%c1, %c0_14, %c0_15] : memref<9x128x128xbf16, #tpu.memory_space<vmem>>, vector<1x128x128xbf16>
    %29 = vector.shape_cast %28 : vector<1x128x128xbf16> to vector<128x128xbf16>
    %cst_16 = arith.constant dense<0.000000e+00> : vector<96x128xf32>
    %30 = tpu.matmul %27, %29, %cst_16 {dimension_numbers = #tpu.dot_dimension_numbers<[1], [0], [0], [1], [0, 0, 1, 1], [], []>} : vector<96x128xbf16>, vector<128x128xbf16>, vector<96x128xf32> -> vector<96x128xf32>
    %31 = arith.addf %25, %30 : vector<96x128xf32>
    %32 = vector.extract_strided_slice %26 {offsets = [24, 0], sizes = [96, 128], strides = [1, 1]} : vector<144x128xbf16> to vector<96x128xbf16>
    %c4 = arith.constant 4 : index
    %c0_17 = arith.constant 0 : index
    %c0_18 = arith.constant 0 : index
    %33 = vector.load %arg4[%c4, %c0_17, %c0_18] : memref<9x128x128xbf16, #tpu.memory_space<vmem>>, vector<1x128x128xbf16>
    %34 = vector.shape_cast %33 : vector<1x128x128xbf16> to vector<128x128xbf16>
    %cst_19 = arith.constant dense<0.000000e+00> : vector<96x128xf32>
    %35 = tpu.matmul %32, %34, %cst_19 {dimension_numbers = #tpu.dot_dimension_numbers<[1], [0], [0], [1], [0, 0, 1, 1], [], []>} : vector<96x128xbf16>, vector<128x128xbf16>, vector<96x128xf32> -> vector<96x128xf32>
    %36 = arith.addf %31, %35 : vector<96x128xf32>
    %37 = vector.extract_strided_slice %26 {offsets = [48, 0], sizes = [96, 128], strides = [1, 1]} : vector<144x128xbf16> to vector<96x128xbf16>
    %c7 = arith.constant 7 : index
    %c0_20 = arith.constant 0 : index
    %c0_21 = arith.constant 0 : index
    %38 = vector.load %arg4[%c7, %c0_20, %c0_21] : memref<9x128x128xbf16, #tpu.memory_space<vmem>>, vector<1x128x128xbf16>
    %39 = vector.shape_cast %38 : vector<1x128x128xbf16> to vector<128x128xbf16>
    %cst_22 = arith.constant dense<0.000000e+00> : vector<96x128xf32>
    %40 = tpu.matmul %37, %39, %cst_22 {dimension_numbers = #tpu.dot_dimension_numbers<[1], [0], [0], [1], [0, 0, 1, 1], [], []>} : vector<96x128xbf16>, vector<128x128xbf16>, vector<96x128xf32> -> vector<96x128xf32>
    %41 = arith.addf %36, %40 : vector<96x128xf32>
    %42 = vector.extract_strided_slice %6 {offsets = [2, 0], sizes = [144, 128], strides = [1, 1]} : vector<168x128xbf16> to vector<144x128xbf16>
    %43 = vector.extract_strided_slice %42 {offsets = [0, 0], sizes = [96, 128], strides = [1, 1]} : vector<144x128xbf16> to vector<96x128xbf16>
    %c2 = arith.constant 2 : index
    %c0_23 = arith.constant 0 : index
    %c0_24 = arith.constant 0 : index
    %44 = vector.load %arg4[%c2, %c0_23, %c0_24] : memref<9x128x128xbf16, #tpu.memory_space<vmem>>, vector<1x128x128xbf16>
    %45 = vector.shape_cast %44 : vector<1x128x128xbf16> to vector<128x128xbf16>
    %cst_25 = arith.constant dense<0.000000e+00> : vector<96x128xf32>
    %46 = tpu.matmul %43, %45, %cst_25 {dimension_numbers = #tpu.dot_dimension_numbers<[1], [0], [0], [1], [0, 0, 1, 1], [], []>} : vector<96x128xbf16>, vector<128x128xbf16>, vector<96x128xf32> -> vector<96x128xf32>
    %47 = arith.addf %41, %46 : vector<96x128xf32>
    %48 = vector.extract_strided_slice %42 {offsets = [24, 0], sizes = [96, 128], strides = [1, 1]} : vector<144x128xbf16> to vector<96x128xbf16>
    %c5 = arith.constant 5 : index
    %c0_26 = arith.constant 0 : index
    %c0_27 = arith.constant 0 : index
    %49 = vector.load %arg4[%c5, %c0_26, %c0_27] : memref<9x128x128xbf16, #tpu.memory_space<vmem>>, vector<1x128x128xbf16>
    %50 = vector.shape_cast %49 : vector<1x128x128xbf16> to vector<128x128xbf16>
    %cst_28 = arith.constant dense<0.000000e+00> : vector<96x128xf32>
    %51 = tpu.matmul %48, %50, %cst_28 {dimension_numbers = #tpu.dot_dimension_numbers<[1], [0], [0], [1], [0, 0, 1, 1], [], []>} : vector<96x128xbf16>, vector<128x128xbf16>, vector<96x128xf32> -> vector<96x128xf32>
    %52 = arith.addf %47, %51 : vector<96x128xf32>
    %53 = vector.extract_strided_slice %42 {offsets = [48, 0], sizes = [96, 128], strides = [1, 1]} : vector<144x128xbf16> to vector<96x128xbf16>
    %c8 = arith.constant 8 : index
    %c0_29 = arith.constant 0 : index
    %c0_30 = arith.constant 0 : index
    %54 = vector.load %arg4[%c8, %c0_29, %c0_30] : memref<9x128x128xbf16, #tpu.memory_space<vmem>>, vector<1x128x128xbf16>
    %55 = vector.shape_cast %54 : vector<1x128x128xbf16> to vector<128x128xbf16>
    %cst_31 = arith.constant dense<0.000000e+00> : vector<96x128xf32>
    %56 = tpu.matmul %53, %55, %cst_31 {dimension_numbers = #tpu.dot_dimension_numbers<[1], [0], [0], [1], [0, 0, 1, 1], [], []>} : vector<96x128xbf16>, vector<128x128xbf16>, vector<96x128xf32> -> vector<96x128xf32>
    %57 = arith.addf %52, %56 : vector<96x128xf32>
    %58 = vector.shape_cast %57 : vector<96x128xf32> to vector<4x24x128xf32>
    %c0_32 = arith.constant 0 : index
    %c0_33 = arith.constant 0 : index
    %c0_34 = arith.constant 0 : index
    %c0_35 = arith.constant 0 : index
    %59 = vector.load %arg6[%c0_32, %c0_33, %c0_34, %c0_35] : memref<1x4x24x128xf32, #tpu.memory_space<vmem>>, vector<1x4x24x128xf32>
    %60 = vector.shape_cast %59 : vector<1x4x24x128xf32> to vector<4x24x128xf32>
    %61 = vector.shape_cast %58 : vector<4x24x128xf32> to vector<1x4x24x128xf32>
    tpu.vector_store %arg6[%c0_32, %c0_33, %c0_34, %c0_35], %61 {strides = array<i32>} : memref<1x4x24x128xf32, #tpu.memory_space<vmem>>, vector<1x4x24x128xf32>,
    return
  }
  func.func @transform_0(%arg0: i32, %arg1: i32, %arg2: i32) -> (i32, i32, i32, i32) {
    %c0_i32 = arith.constant 0 : i32
    %c0_i32_0 = arith.constant 0 : i32
    %c0_i32_1 = arith.constant 0 : i32
    %c0_i32_2 = arith.constant 0 : i32
    return %arg0, %c0_i32, %c0_i32_0, %c0_i32_1 : i32, i32, i32, i32
  }
  func.func @transform_1(%arg0: i32, %arg1: i32, %arg2: i32) -> (i32, i32, i32) {
    %c0_i32 = arith.constant 0 : i32
    %c0_i32_0 = arith.constant 0 : i32
    %c0_i32_1 = arith.constant 0 : i32
    return %c0_i32, %c0_i32_0, %arg1 : i32, i32, i32
  }
  func.func @transform_2(%arg0: i32, %arg1: i32, %arg2: i32) -> (i32, i32) {
    %c0_i32 = arith.constant 0 : i32
    %c0_i32_0 = arith.constant 0 : i32
    return %c0_i32, %arg1 : i32, i32
  }
  func.func @transform_3(%arg0: i32, %arg1: i32, %arg2: i32) -> (i32, i32, i32, i32) {
    %c0_i32 = arith.constant 0 : i32
    %c0_i32_0 = arith.constant 0 : i32
    return %arg0, %arg2, %c0_i32, %arg1 : i32, i32, i32, i32
  }
}

</mosaic_0001>

<llo_original>
// kernel: tpu_custom_call.1
$region0: #{tpu_custom_call.1}
  #allocation0 [shape = 'u32[]', space=smem, size = 0x4, offset = 0x4, fixed_abs, tag = 'smem constant byte address 0x4 - core index']
  #allocation1 [shape = 'u32[72,128]{1,0:T(1,128)}', space=vmem, size = 0x9000, scoped, tag = 'internal scratch']
  %s0 = inlined_call_operand.hbm [shape: bf16[1,19,24,128], index: 0, kind: input, shape index: {}]
  %s1 = inlined_call_operand.hbm [shape: bf16[9,128,128], index: 1, kind: input, shape index: {}]
  %s2 = inlined_call_operand.vmem [shape: f32[1,128], index: 2, kind: input, shape index: {}]
  %s3 = inlined_call_operand.hbm [shape: f32[1,16,24,128], index: 3, kind: output, shape index: {}]
  %s4 = sld [smem:[#allocation0]]
  $region53: #{tpu_custom_call.1} parent=0
    _
  %s6 = ssub.s32 1, %s4
  %s7 = scalar_select 0, %s6, %s4
  $region1: #{tpu_custom_call.1} parent=0
    #allocation2 [shape = 'u8[116736]{0}', space=vmem, size = 0x1c800, scoped, tag = 'input window, operand 0, single buffered']
    #allocation3 [shape = 's32[2]{0}', space=sflag, size = 0x8, scoped, tag = 'scoped memory for tpu_custom_call.1']
    #allocation4 [shape = 's32[2]{0}', space=sflag, size = 0x8, scoped, tag = 'scoped memory for tpu_custom_call.1']
    #allocation5 [shape = 'u8[294912]{0}', space=vmem, size = 0x48000, scoped, tag = 'input window, operand 1, single buffered']
    #allocation6 [shape = 's32[1]{0}', space=sflag, size = 0x4, scoped, tag = 'scoped memory for tpu_custom_call.1']
    #allocation7 [shape = 'u8[98304]{0}', space=vmem, size = 0x18000, scoped, tag = 'output window, operand 0']
    %8 = vsyncpa [#allocation3], 0
    %9 = vsyncpa [#allocation6], 0
    %10 = vsyncpa [#allocation4], 0
    %s11 = scalar_lea.sflag [#allocation4], 1
    %12 = vsyncpa %s11, 0
    loop: start=0, step=1, limit=6
    $region2: #{tpu_custom_call.1} parent=1 // loop_pre_header
      _
    $region3: #{tpu_custom_call.1} parent=1 // loop_header
      %s14 = sphi 0, %s18
      %p15 = scmp.ge.s32.totalorder %s14, 6
      %s21 = sphi 0, %s40
      %s22 = sphi 0, %s36
      %s23 = sphi 0, %s32
      %s24 = sphi 0, %s21
      %s25 = sphi 0, %s22
      %s26 = sphi 0, %s23
      %s27 = sphi 0, %s24
      %s28 = sphi 0, %s25
      %s29 = sphi 0, %s26
      %s43 = sphi 0, %s45
      %s46 = sphi 0, %s43
      %s47 = sphi 0, %s46
      %s63 = sphi 0, %s47
      %s69 = sphi 0, %s71
      %s72 = sphi 0, %s69
      %s73 = sphi 0, %s72
      %s89 = sphi 0, %s73
      %s95 = sphi 0, %s97
      %s98 = sphi 0, %s95
      %s99 = sphi 0, %s98
      %s115 = sphi 0, %s99
      %s125 = sphi 0, %s127
      %s128 = sphi 0, %s125
      %s129 = sphi 0, %s128
      %s145 = sphi 0, %s129
    $region4: #{tpu_custom_call.1} parent=1 // loop_header_branch
      %17 = sbr.rel (%p15) target = $region8
    $region5: #{tpu_custom_call.1} parent=1 // loop_body
      %s19 = ssub.s32 %s14, 1
      %s20 = ssub.s32 %s14, 2
      %s30 = sadd.s32 1, %s23
      %p31 = scmp.ge.s32.totalorder %s30, 4
      %s32 = scalar_select %p31, 0, %s30
      %s33 = sadd.s32 1, %s22
      %s34 = scalar_select %p31, %s33, %s22
      %p35 = scmp.ge.s32.totalorder %s34, 1
      %s36 = scalar_select %p35, 0, %s34
      %s37 = sadd.s32 1, %s21
      %s38 = scalar_select %p35, %s37, %s21
      %p39 = scmp.ge.s32.totalorder %s38, 1
      %s40 = scalar_select %p39, 0, %s38
      %s41 = ssub.s32 %s21, %s40
      %p42 = scmp.eq.s32.totalorder %s41, 0
      %s44 = sadd.s32 %s43, 1
      %s45 = scalar_select %p42, %s43, %s44
      %p48 = pneg %p42
      %p49 = scmp.eq.s32.totalorder %s14, 3
      %p50 = por %p48, %p49
      %p51 = scmp.ne.s32.totalorder %s43, %s46
      %p52 = scmp.eq.s32.totalorder %s14, 0
      %p53 = por %p51, %p52
      %p54 = scmp.ne.s32.totalorder %s43, %s46
      %p55 = scmp.eq.s32.totalorder %s19, 3
      %p56 = por %p54, %p55
      %p57 = scmp.ne.s32.totalorder %s46, %s47
      %p58 = scmp.eq.s32.totalorder %s19, 0
      %p59 = por %p57, %p58
      %p60 = scmp.ne.s32.totalorder %s46, %s47
      %p61 = scmp.eq.s32.totalorder %s20, 3
      %p62 = por %p60, %p61
      %p64 = scmp.ne.s32.totalorder %s47, %s63
      %p65 = scmp.eq.s32.totalorder %s20, 0
      %p66 = por %p64, %p65
      %s67 = ssub.s32 %s22, %s36
      %p68 = scmp.eq.s32.totalorder %s67, 0
      %s70 = sadd.s32 %s69, 1
      %s71 = scalar_select %p68, %s69, %s70
      %p74 = pneg %p68
      %p75 = scmp.eq.s32.totalorder %s14, 3
      %p76 = por %p74, %p75
      %p77 = scmp.ne.s32.totalorder %s69, %s72
      %p78 = scmp.eq.s32.totalorder %s14, 0
      %p79 = por %p77, %p78
      %p80 = scmp.ne.s32.totalorder %s69, %s72
      %p81 = scmp.eq.s32.totalorder %s19, 3
      %p82 = por %p80, %p81
      %p83 = scmp.ne.s32.totalorder %s72, %s73
      %p84 = scmp.eq.s32.totalorder %s19, 0
      %p85 = por %p83, %p84
      %p86 = scmp.ne.s32.totalorder %s72, %s73
      %p87 = scmp.eq.s32.totalorder %s20, 3
      %p88 = por %p86, %p87
      %p90 = scmp.ne.s32.totalorder %s73, %s89
      %p91 = scmp.eq.s32.totalorder %s20, 0
      %p92 = por %p90, %p91
      %s93 = ssub.s32 %s22, %s36
      %p94 = scmp.eq.s32.totalorder %s93, 0
      %s96 = sadd.s32 %s95, 1
      %s97 = scalar_select %p94, %s95, %s96
      %p100 = pneg %p94
      %p101 = scmp.eq.s32.totalorder %s14, 3
      %p102 = por %p100, %p101
      %p103 = scmp.ne.s32.totalorder %s95, %s98
      %p104 = scmp.eq.s32.totalorder %s14, 0
      %p105 = por %p103, %p104
      %p106 = scmp.ne.s32.totalorder %s95, %s98
      %p107 = scmp.eq.s32.totalorder %s19, 3
      %p108 = por %p106, %p107
      %p109 = scmp.ne.s32.totalorder %s98, %s99
      %p110 = scmp.eq.s32.totalorder %s19, 0
      %p111 = por %p109, %p110
      %p112 = scmp.ne.s32.totalorder %s98, %s99
      %p113 = scmp.eq.s32.totalorder %s20, 3
      %p114 = por %p112, %p113
      %p116 = scmp.ne.s32.totalorder %s99, %s115
      %p117 = scmp.eq.s32.totalorder %s20, 0
      %p118 = por %p116, %p117
      %s119 = ssub.s32 %s21, %s40
      %s120 = ssub.s32 %s23, %s32
      %s121 = sor.u32 %s119, %s120
      %s122 = ssub.s32 %s22, %s36
      %s123 = sor.u32 %s121, %s122
      %p124 = scmp.eq.s32.totalorder %s123, 0
      %s126 = sadd.s32 %s125, 1
      %s127 = scalar_select %p124, %s125, %s126
      %p130 = pneg %p124
      %p131 = scmp.eq.s32.totalorder %s14, 3
      %p132 = por %p130, %p131
      %p133 = scmp.ne.s32.totalorder %s125, %s128
      %p134 = scmp.eq.s32.totalorder %s14, 0
      %p135 = por %p133, %p134
      %p136 = scmp.ne.s32.totalorder %s125, %s128
      %p137 = scmp.eq.s32.totalorder %s19, 3
      %p138 = por %p136, %p137
      %p139 = scmp.ne.s32.totalorder %s128, %s129
      %p140 = scmp.eq.s32.totalorder %s19, 0
      %p141 = por %p139, %p140
      %p142 = scmp.ne.s32.totalorder %s128, %s129
      %p143 = scmp.eq.s32.totalorder %s20, 3
      %p144 = por %p142, %p143
      %p146 = scmp.ne.s32.totalorder %s129, %s145
      %p147 = scmp.eq.s32.totalorder %s20, 0
      %p148 = por %p146, %p147
      %p149 = scmp.le.s32.totalorder 1, %s14
      %p150 = scmp.lt.s32.totalorder %s14, 5
      %p151 = pnand %p149, %p150
      %p152 = pneg %p151
      // Predicated region
      $region9: #{tpu_custom_call.1} parent=5 // pred_check
        _
      $region10: #{tpu_custom_call.1} parent=5 // pred_check_branch
        %154 = sbr.rel (%p151) target = $region12
      $region11: #{tpu_custom_call.1} parent=5 // pred_region
        %s155 = ssub.s32 %s14, 1
        // Predicated region
        $region13: #{tpu_custom_call.1} parent=11 // pred_check
          %p156 = pneg %p59
        $region14: #{tpu_custom_call.1} parent=11 // pred_check_branch
          %158 = sbr.rel (%p156) target = $region16
        $region15: #{tpu_custom_call.1} parent=11 // pred_region
          %160 = vsyncadd [#allocation3], 0
          %s161 = smul.addr %s24, 57
          %s162 = smul.addr %s161, 4
          %s163 = scalar_lea.hbm %s0, %s162
          %s164 = sshll.u32 %s163, 4
          %s165 = int_to_ptr.hbm [resolvable:$true] %s164
          %s166 = sshll.u32 [#allocation2], 4
          %s167 = int_to_ptr.vmem [resolvable:$true] %s166
          %172 = dma.hbm_to_vmem [thread:$0]  %s165, 3648, %s167, [#allocation3], 64, 64, 4
        $region16: #{tpu_custom_call.1} parent=11 // pred_fallthru
          _
        // Predicated region
        $region17: #{tpu_custom_call.1} parent=11 // pred_check
          %p173 = pneg %p85
        $region18: #{tpu_custom_call.1} parent=11 // pred_check_branch
          %175 = sbr.rel (%p173) target = $region20
        $region19: #{tpu_custom_call.1} parent=11 // pred_region
          %177 = vsyncadd [#allocation6], 0
          %s178 = smul.addr %s25, 4
          %s179 = scalar_lea.hbm %s1, %s178
          %s180 = sshll.u32 %s179, 4
          %s181 = int_to_ptr.hbm [resolvable:$true] %s180
          %s182 = sshll.u32 [#allocation5], 4
          %s183 = int_to_ptr.vmem [resolvable:$true] %s182
          %188 = dma.hbm_to_vmem [thread:$0]  %s181, 9216, %s183, [#allocation6], 64, 64, 4
        $region20: #{tpu_custom_call.1} parent=11 // pred_fallthru
          _
        // Predicated region
        $region21: #{tpu_custom_call.1} parent=11 // pred_check
          %p189 = pneg %p111
        $region22: #{tpu_custom_call.1} parent=11 // pred_check_branch
          %191 = sbr.rel (%p189) target = $region24
        $region23: #{tpu_custom_call.1} parent=11 // pred_region
          %p192 = scmp.lt.s32.totalorder %s25, 0
          %s193 = scalar_select %p192, %s25, 0
          %s194 = scalar_lea.vmem %s2, %s193
        $region24: #{tpu_custom_call.1} parent=11 // pred_fallthru
          _
      $region12: #{tpu_custom_call.1} parent=5 // pred_fallthru
        _
      %p195 = scmp.lt.s32.totalorder %s14, 4
      // Predicated region
      $region25: #{tpu_custom_call.1} parent=5 // pred_check
        %p196 = pneg %p195
      $region26: #{tpu_custom_call.1} parent=5 // pred_check_branch
        %198 = sbr.rel (%p196) target = $region28
      $region27: #{tpu_custom_call.1} parent=5 // pred_region
        _
      $region28: #{tpu_custom_call.1} parent=5 // pred_fallthru
        _
      %p199 = scmp.le.s32.totalorder 1, %s14
      %p200 = scmp.lt.s32.totalorder %s14, 5
      %p201 = pnand %p199, %p200
      %p202 = pneg %p201
      // Predicated region
      $region29: #{tpu_custom_call.1} parent=5 // pred_check
        _
      $region30: #{tpu_custom_call.1} parent=5 // pred_check_branch
        %204 = sbr.rel (%p201) target = $region32
      $region31: #{tpu_custom_call.1} parent=5 // pred_region
        %s205 = ssub.s32 %s14, 1
        // Predicated region
        $region33: #{tpu_custom_call.1} parent=31 // pred_check
          %p206 = pneg %p59
        $region34: #{tpu_custom_call.1} parent=31 // pred_check_branch
          %208 = sbr.rel (%p206) target = $region36
        $region35: #{tpu_custom_call.1} parent=31 // pred_region
          %210 = dma.done [#allocation3], 3648
        $region36: #{tpu_custom_call.1} parent=31 // pred_fallthru
          _
        // Predicated region
        $region37: #{tpu_custom_call.1} parent=31 // pred_check
          %p211 = pneg %p85
        $region38: #{tpu_custom_call.1} parent=31 // pred_check_branch
          %213 = sbr.rel (%p211) target = $region40
        $region39: #{tpu_custom_call.1} parent=31 // pred_region
          %215 = dma.done [#allocation6], 9216
        $region40: #{tpu_custom_call.1} parent=31 // pred_fallthru
          _
        %p216 = pneg %p59
        %p217 = pneg %p56
        %p218 = pneg %p85
        %p219 = pneg %p82
        %p220 = scmp.lt.s32.totalorder %s25, 0
        %s221 = scalar_select %p220, %s25, 0
        %s222 = scalar_lea.vmem %s2, %s221
        %p223 = pneg %p111
        %p224 = pneg %p108
        %p225 = pneg %p141
        %p226 = pneg %p138
        %s227 = sand.u32 %s128, 1
        %s228 = scalar_lea.sflag [#allocation4], %s227
        %s229 = sand.u32 %s128, 1
        %s230 = smul.addr %s229, 96
        %s231 = scalar_lea.vmem [#allocation7], %s230
        %p232 = scmp.lt.s32.totalorder %s25, 0
        %s233 = scalar_select %p232, %s25, 0
        %s234 = scalar_lea.vmem %s2, %s233
        %s235 = smul.u32 4, %s26
        %s236 = smul.u32 %s26, 4
        %s237 = smul.u32 %s236, 3
        %s238 = smul.addr %s237, 4
        %s239 = scalar_lea.vmem [#allocation2], %s238
        %v240 = vld [vmem:[%s239] sm:$0xf]
        %v241 = vld [vmem:[%s239 + $0x4] sm:$0xf]
        %v242 = vld [vmem:[%s239 + $0x8] sm:$0xf]
        %v243 = vld [vmem:[%s239 + $0xc] sm:$0xf]
        %v244 = vld [vmem:[%s239 + $0x10] sm:$0xf]
        %v245 = vld [vmem:[%s239 + $0x14] sm:$0xf]
        %v246 = vld [vmem:[%s239 + $0x18] sm:$0xf]
        %v247 = vld [vmem:[%s239 + $0x1c] sm:$0xf]
        %v248 = vld [vmem:[%s239 + $0x20] sm:$0xf]
        %v249 = vld [vmem:[%s239 + $0x24] sm:$0xf]
        %v250 = vld [vmem:[%s239 + $0x28] sm:$0xf]
        %v251 = vld [vmem:[%s239 + $0x2c] sm:$0xf]
        %v252 = vld [vmem:[%s239 + $0x30] sm:$0xf]
        %v253 = vld [vmem:[%s239 + $0x34] sm:$0xf]
        %v254 = vld [vmem:[%s239 + $0x38] sm:$0xf]
        %v255 = vld [vmem:[%s239 + $0x3c] sm:$0xf]
        %v256 = vld [vmem:[%s239 + $0x40] sm:$0xf]
        %v257 = vld [vmem:[%s239 + $0x44] sm:$0xf]
        %v258 = vld [vmem:[%s239 + $0x48] sm:$0xf]
        %v259 = vunpack.c.l.bf16 %v240
        %v260 = vunpack.c.l.bf16 %v241
        %v261 = vunpack.c.l.bf16 %v242
        %v262 = vunpack.c.l.bf16 %v243
        %v263 = vunpack.c.l.bf16 %v244
        %v264 = vunpack.c.l.bf16 %v245
        %v265 = vunpack.c.l.bf16 %v246
        %v266 = vunpack.c.l.bf16 %v247
        %v267 = vunpack.c.l.bf16 %v248
        %v268 = vunpack.c.l.bf16 %v249
        %v269 = vunpack.c.l.bf16 %v250
        %v270 = vunpack.c.l.bf16 %v251
        %v271 = vunpack.c.l.bf16 %v252
        %v272 = vunpack.c.l.bf16 %v253
        %v273 = vunpack.c.l.bf16 %v254
        %v274 = vunpack.c.l.bf16 %v255
        %v275 = vunpack.c.l.bf16 %v256
        %v276 = vunpack.c.l.bf16 %v257
        %v277 = vunpack.c.l.bf16 %v258
        %v278 = vmax.f32 %v259, 0.0
        %v279 = vmax.f32 %v260, 0.0
        %v280 = vmax.f32 %v261, 0.0
        %v281 = vmax.f32 %v262, 0.0
        %v282 = vmax.f32 %v263, 0.0
        %v283 = vmax.f32 %v264, 0.0
        %v284 = vmax.f32 %v265, 0.0
        %v285 = vmax.f32 %v266, 0.0
        %v286 = vmax.f32 %v267, 0.0
        %v287 = vmax.f32 %v268, 0.0
        %v288 = vmax.f32 %v269, 0.0
        %v289 = vmax.f32 %v270, 0.0
        %v290 = vmax.f32 %v271, 0.0
        %v291 = vmax.f32 %v272, 0.0
        %v292 = vmax.f32 %v273, 0.0
        %v293 = vmax.f32 %v274, 0.0
        %v294 = vmax.f32 %v275, 0.0
        %v295 = vmax.f32 %v276, 0.0
        %v296 = vmax.f32 %v277, 0.0
        %v297 = vpack.c.bf16 %v278, %v278
        %v298 = vpack.c.bf16 %v279, %v279
        %v299 = vpack.c.bf16 %v280, %v280
        %v300 = vpack.c.bf16 %v281, %v281
        %v301 = vpack.c.bf16 %v282, %v282
        %v302 = vpack.c.bf16 %v283, %v283
        %v303 = vpack.c.bf16 %v284, %v284
        %v304 = vpack.c.bf16 %v285, %v285
        %v305 = vpack.c.bf16 %v286, %v286
        %v306 = vpack.c.bf16 %v287, %v287
        %v307 = vpack.c.bf16 %v288, %v288
        %v308 = vpack.c.bf16 %v289, %v289
        %v309 = vpack.c.bf16 %v290, %v290
        %v310 = vpack.c.bf16 %v291, %v291
        %v311 = vpack.c.bf16 %v292, %v292
        %v312 = vpack.c.bf16 %v293, %v293
        %v313 = vpack.c.bf16 %v294, %v294
        %v314 = vpack.c.bf16 %v295, %v295
        %v315 = vpack.c.bf16 %v296, %v296
        %v316 = vld [vmem:[%s234] sm:$0x1]
        %v318 = vperm.slane %v316, 0
        %v320 = vld [vmem:[#allocation5] sm:$0xf]
        %v321 = vld [vmem:[#allocation5 + $0x4] sm:$0xf]
        %v322 = vld [vmem:[#allocation5 + $0x8] sm:$0xf]
        %v323 = vld [vmem:[#allocation5 + $0xc] sm:$0xf]
        %v324 = vld [vmem:[#allocation5 + $0x10] sm:$0xf]
        %v325 = vld [vmem:[#allocation5 + $0x14] sm:$0xf]
        %v326 = vld [vmem:[#allocation5 + $0x18] sm:$0xf]
        %v327 = vld [vmem:[#allocation5 + $0x1c] sm:$0xf]
        %v328 = vld [vmem:[#allocation5 + $0x20] sm:$0xf]
        %v329 = vld [vmem:[#allocation5 + $0x24] sm:$0xf]
        %v330 = vld [vmem:[#allocation5 + $0x28] sm:$0xf]
        %v331 = vld [vmem:[#allocation5 + $0x2c] sm:$0xf]
        %v332 = vld [vmem:[#allocation5 + $0x30] sm:$0xf]
        %v333 = vld [vmem:[#allocation5 + $0x34] sm:$0xf]
        %v334 = vld [vmem:[#allocation5 + $0x38] sm:$0xf]
        %v335 = vld [vmem:[#allocation5 + $0x3c] sm:$0xf]
        %v348 = vunpack.c.l.b16 %v297
        %v349 = vunpack.c.l.b16 %v298
        %v350 = vunpack.c.l.b16 %v299
        %v351 = vunpack.c.l.b16 %v300
        %v352 = vunpack.c.l.b16 %v301
        %v353 = vunpack.c.l.b16 %v302
        %v354 = vunpack.c.l.b16 %v303
        %v355 = vunpack.c.l.b16 %v304
        %v356 = vunpack.c.l.b16 %v305
        %v357 = vunpack.c.l.b16 %v306
        %v358 = vunpack.c.l.b16 %v307
        %v359 = vunpack.c.l.b16 %v308
        %v360 = vpack.c.b16 %v349, %v348
        %v361 = vpack.c.b16 %v351, %v350
        %v362 = vpack.c.b16 %v353, %v352
        %v363 = vpack.c.b16 %v355, %v354
        %v364 = vpack.c.b16 %v357, %v356
        %v365 = vpack.c.b16 %v359, %v358
        %v388 = vunpack.c.l.b16 %v320
        %v389 = vunpack.c.l.b16 %v321
        %v390 = vunpack.c.l.b16 %v322
        %v391 = vunpack.c.l.b16 %v323
        %v392 = vunpack.c.l.b16 %v324
        %v393 = vunpack.c.l.b16 %v325
        %v394 = vunpack.c.l.b16 %v326
        %v395 = vunpack.c.l.b16 %v327
        %v396 = vunpack.c.l.b16 %v328
        %v397 = vunpack.c.l.b16 %v329
        %v398 = vunpack.c.l.b16 %v330
        %v399 = vunpack.c.l.b16 %v331
        %v400 = vunpack.c.l.b16 %v332
        %v401 = vunpack.c.l.b16 %v333
        %v402 = vunpack.c.l.b16 %v334
        %v403 = vunpack.c.l.b16 %v335
        %v404 = vpack.c.b16 %v389, %v388
        %v405 = vpack.c.b16 %v391, %v390
        %v406 = vpack.c.b16 %v393, %v392
        %v407 = vpack.c.b16 %v395, %v394
        %v408 = vpack.c.b16 %v397, %v396
        %v409 = vpack.c.b16 %v399, %v398
        %v410 = vpack.c.b16 %v401, %v400
        %v411 = vpack.c.b16 %v403, %v402
        %420 = vmatpush.bf16.msra.mxu0 %v411
        %421 = vmatpush.bf16.msra.mxu0 %v410
        %422 = vmatpush.bf16.msra.mxu0 %v409
        %423 = vmatpush.bf16.msra.mxu0 %v408
        %424 = vmatpush.bf16.msra.mxu0 %v407
        %425 = vmatpush.bf16.msra.mxu0 %v406
        %426 = vmatpush.bf16.msra.mxu0 %v405
        %427 = vmatpush.bf16.msra.mxu0 %v404
        %428 = vmatmul.bf16.gmra.mxu0 %v360
        %v429 = vpop.f32.mrf.mxu0
        %v430 = vadd.f32 0.0, %v429
        %v431 = vpop.f32.mrf.mxu0
        %v432 = vadd.f32 0.0, %v431
        %433 = vmatmul.bf16.gmra.mxu0 %v361
        %v434 = vpop.f32.mrf.mxu0
        %v435 = vadd.f32 0.0, %v434
        %v436 = vpop.f32.mrf.mxu0
        %v437 = vadd.f32 0.0, %v436
        %438 = vmatmul.bf16.gmra.mxu0 %v362
        %v439 = vpop.f32.mrf.mxu0
        %v440 = vadd.f32 0.0, %v439
        %v441 = vpop.f32.mrf.mxu0
        %v442 = vadd.f32 0.0, %v441
        %443 = vmatmul.bf16.gmra.mxu0 %v363
        %v444 = vpop.f32.mrf.mxu0
        %v445 = vadd.f32 0.0, %v444
        %v446 = vpop.f32.mrf.mxu0
        %v447 = vadd.f32 0.0, %v446
        %448 = vmatmul.bf16.gmra.mxu0 %v364
        %v449 = vpop.f32.mrf.mxu0
        %v450 = vadd.f32 0.0, %v449
        %v451 = vpop.f32.mrf.mxu0
        %v452 = vadd.f32 0.0, %v451
        %453 = vmatmul.bf16.gmra.mxu0 %v365
        %v454 = vpop.f32.mrf.mxu0
        %v455 = vadd.f32 0.0, %v454
        %v456 = vpop.f32.mrf.mxu0
        %v457 = vadd.f32 0.0, %v456
        %458 = vdwg.mxu0
        %v459 = vadd.f32 %v318, %v430
        %v460 = vadd.f32 %v318, %v432
        %v461 = vadd.f32 %v318, %v435
        %v462 = vadd.f32 %v318, %v437
        %v463 = vadd.f32 %v318, %v440
        %v464 = vadd.f32 %v318, %v442
        %v465 = vadd.f32 %v318, %v445
        %v466 = vadd.f32 %v318, %v447
        %v467 = vadd.f32 %v318, %v450
        %v468 = vadd.f32 %v318, %v452
        %v469 = vadd.f32 %v318, %v455
        %v470 = vadd.f32 %v318, %v457
        %s471 = scalar_lea.vmem [#allocation5], 192
        %v472 = vld [vmem:[%s471] sm:$0xf]
        %v473 = vld [vmem:[%s471 + $0x4] sm:$0xf]
        %v474 = vld [vmem:[%s471 + $0x8] sm:$0xf]
        %v475 = vld [vmem:[%s471 + $0xc] sm:$0xf]
        %v476 = vld [vmem:[%s471 + $0x10] sm:$0xf]
        %v477 = vld [vmem:[%s471 + $0x14] sm:$0xf]
        %v478 = vld [vmem:[%s471 + $0x18] sm:$0xf]
        %v479 = vld [vmem:[%s471 + $0x1c] sm:$0xf]
        %v480 = vld [vmem:[%s471 + $0x20] sm:$0xf]
        %v481 = vld [vmem:[%s471 + $0x24] sm:$0xf]
        %v482 = vld [vmem:[%s471 + $0x28] sm:$0xf]
        %v483 = vld [vmem:[%s471 + $0x2c] sm:$0xf]
        %v484 = vld [vmem:[%s471 + $0x30] sm:$0xf]
        %v485 = vld [vmem:[%s471 + $0x34] sm:$0xf]
        %v486 = vld [vmem:[%s471 + $0x38] sm:$0xf]
        %v487 = vld [vmem:[%s471 + $0x3c] sm:$0xf]
        %v491 = vunpack.c.l.b16 %v309
        %v492 = vunpack.c.l.b16 %v310
        %v493 = vunpack.c.l.b16 %v311
        %v494 = vpack.c.b16 %v352, %v351
        %v495 = vpack.c.b16 %v354, %v353
        %v496 = vpack.c.b16 %v356, %v355
        %v497 = vpack.c.b16 %v358, %v357
        %v498 = vpack.c.b16 %v491, %v359
        %v499 = vpack.c.b16 %v493, %v492
        %v522 = vunpack.c.l.b16 %v472
        %v523 = vunpack.c.l.b16 %v473
        %v524 = vunpack.c.l.b16 %v474
        %v525 = vunpack.c.l.b16 %v475
        %v526 = vunpack.c.l.b16 %v476
        %v527 = vunpack.c.l.b16 %v477
        %v528 = vunpack.c.l.b16 %v478
        %v529 = vunpack.c.l.b16 %v479
        %v530 = vunpack.c.l.b16 %v480
        %v531 = vunpack.c.l.b16 %v481
        %v532 = vunpack.c.l.b16 %v482
        %v533 = vunpack.c.l.b16 %v483
        %v534 = vunpack.c.l.b16 %v484
        %v535 = vunpack.c.l.b16 %v485
        %v536 = vunpack.c.l.b16 %v486
        %v537 = vunpack.c.l.b16 %v487
        %v538 = vpack.c.b16 %v523, %v522
        %v539 = vpack.c.b16 %v525, %v524
        %v540 = vpack.c.b16 %v527, %v526
        %v541 = vpack.c.b16 %v529, %v528
        %v542 = vpack.c.b16 %v531, %v530
        %v543 = vpack.c.b16 %v533, %v532
        %v544 = vpack.c.b16 %v535, %v534
        %v545 = vpack.c.b16 %v537, %v536
        %554 = vmatpush.bf16.msra.mxu0 %v545
        %555 = vmatpush.bf16.msra.mxu0 %v544
        %556 = vmatpush.bf16.msra.mxu0 %v543
        %557 = vmatpush.bf16.msra.mxu0 %v542
        %558 = vmatpush.bf16.msra.mxu0 %v541
        %559 = vmatpush.bf16.msra.mxu0 %v540
        %560 = vmatpush.bf16.msra.mxu0 %v539
        %561 = vmatpush.bf16.msra.mxu0 %v538
        %562 = vmatmul.bf16.gmra.mxu0 %v494
        %v563 = vpop.f32.mrf.mxu0
        %v564 = vadd.f32 0.0, %v563
        %v565 = vpop.f32.mrf.mxu0
        %v566 = vadd.f32 0.0, %v565
        %567 = vmatmul.bf16.gmra.mxu0 %v495
        %v568 = vpop.f32.mrf.mxu0
        %v569 = vadd.f32 0.0, %v568
        %v570 = vpop.f32.mrf.mxu0
        %v571 = vadd.f32 0.0, %v570
        %572 = vmatmul.bf16.gmra.mxu0 %v496
        %v573 = vpop.f32.mrf.mxu0
        %v574 = vadd.f32 0.0, %v573
        %v575 = vpop.f32.mrf.mxu0
        %v576 = vadd.f32 0.0, %v575
        %577 = vmatmul.bf16.gmra.mxu0 %v497
        %v578 = vpop.f32.mrf.mxu0
        %v579 = vadd.f32 0.0, %v578
        %v580 = vpop.f32.mrf.mxu0
        %v581 = vadd.f32 0.0, %v580
        %582 = vmatmul.bf16.gmra.mxu0 %v498
        %v583 = vpop.f32.mrf.mxu0
        %v584 = vadd.f32 0.0, %v583
        %v585 = vpop.f32.mrf.mxu0
        %v586 = vadd.f32 0.0, %v585
        %587 = vmatmul.bf16.gmra.mxu0 %v499
        %v588 = vpop.f32.mrf.mxu0
        %v589 = vadd.f32 0.0, %v588
        %v590 = vpop.f32.mrf.mxu0
        %v591 = vadd.f32 0.0, %v590
        %592 = vdwg.mxu0
        %v593 = vadd.f32 %v459, %v564
        %v594 = vadd.f32 %v460, %v566
        %v595 = vadd.f32 %v461, %v569
        %v596 = vadd.f32 %v462, %v571
        %v597 = vadd.f32 %v463, %v574
        %v598 = vadd.f32 %v464, %v576
        %v599 = vadd.f32 %v465, %v579
        %v600 = vadd.f32 %v466, %v581
        %v601 = vadd.f32 %v467, %v584
        %v602 = vadd.f32 %v468, %v586
        %v603 = vadd.f32 %v469, %v589
        %v604 = vadd.f32 %v470, %v591
        %s605 = scalar_lea.vmem [#allocation5], 384
        %v606 = vld [vmem:[%s605] sm:$0xf]
        %v607 = vld [vmem:[%s605 + $0x4] sm:$0xf]
        %v608 = vld [vmem:[%s605 + $0x8] sm:$0xf]
        %v609 = vld [vmem:[%s605 + $0xc] sm:$0xf]
        %v610 = vld [vmem:[%s605 + $0x10] sm:$0xf]
        %v611 = vld [vmem:[%s605 + $0x14] sm:$0xf]
        %v612 = vld [vmem:[%s605 + $0x18] sm:$0xf]
        %v613 = vld [vmem:[%s605 + $0x1c] sm:$0xf]
        %v614 = vld [vmem:[%s605 + $0x20] sm:$0xf]
        %v615 = vld [vmem:[%s605 + $0x24] sm:$0xf]
        %v616 = vld [vmem:[%s605 + $0x28] sm:$0xf]
        %v617 = vld [vmem:[%s605 + $0x2c] sm:$0xf]
        %v618 = vld [vmem:[%s605 + $0x30] sm:$0xf]
        %v619 = vld [vmem:[%s605 + $0x34] sm:$0xf]
        %v620 = vld [vmem:[%s605 + $0x38] sm:$0xf]
        %v621 = vld [vmem:[%s605 + $0x3c] sm:$0xf]
        %v625 = vunpack.c.l.b16 %v312
        %v626 = vunpack.c.l.b16 %v313
        %v627 = vunpack.c.l.b16 %v314
        %v628 = vpack.c.b16 %v492, %v491
        %v629 = vpack.c.b16 %v625, %v493
        %v630 = vpack.c.b16 %v627, %v626
        %v650 = vunpack.c.l.b16 %v606
        %v651 = vunpack.c.l.b16 %v607
        %v652 = vunpack.c.l.b16 %v608
        %v653 = vunpack.c.l.b16 %v609
        %v654 = vunpack.c.l.b16 %v610
        %v655 = vunpack.c.l.b16 %v611
        %v656 = vunpack.c.l.b16 %v612
        %v657 = vunpack.c.l.b16 %v613
        %v658 = vunpack.c.l.b16 %v614
        %v659 = vunpack.c.l.b16 %v615
        %v660 = vunpack.c.l.b16 %v616
        %v661 = vunpack.c.l.b16 %v617
        %v662 = vunpack.c.l.b16 %v618
        %v663 = vunpack.c.l.b16 %v619
        %v664 = vunpack.c.l.b16 %v620
        %v665 = vunpack.c.l.b16 %v621
        %v666 = vpack.c.b16 %v651, %v650
        %v667 = vpack.c.b16 %v653, %v652
        %v668 = vpack.c.b16 %v655, %v654
        %v669 = vpack.c.b16 %v657, %v656
        %v670 = vpack.c.b16 %v659, %v658
        %v671 = vpack.c.b16 %v661, %v660
        %v672 = vpack.c.b16 %v663, %v662
        %v673 = vpack.c.b16 %v665, %v664
        %682 = vmatpush.bf16.msra.mxu0 %v673
        %683 = vmatpush.bf16.msra.mxu0 %v672
        %684 = vmatpush.bf16.msra.mxu0 %v671
        %685 = vmatpush.bf16.msra.mxu0 %v670
        %686 = vmatpush.bf16.msra.mxu0 %v669
        %687 = vmatpush.bf16.msra.mxu0 %v668
        %688 = vmatpush.bf16.msra.mxu0 %v667
        %689 = vmatpush.bf16.msra.mxu0 %v666
        %690 = vmatmul.bf16.gmra.mxu0 %v363
        %v691 = vpop.f32.mrf.mxu0
        %v692 = vadd.f32 0.0, %v691
        %v693 = vpop.f32.mrf.mxu0
        %v694 = vadd.f32 0.0, %v693
        %695 = vmatmul.bf16.gmra.mxu0 %v364
        %v696 = vpop.f32.mrf.mxu0
        %v697 = vadd.f32 0.0, %v696
        %v698 = vpop.f32.mrf.mxu0
        %v699 = vadd.f32 0.0, %v698
        %700 = vmatmul.bf16.gmra.mxu0 %v365
        %v701 = vpop.f32.mrf.mxu0
        %v702 = vadd.f32 0.0, %v701
        %v703 = vpop.f32.mrf.mxu0
        %v704 = vadd.f32 0.0, %v703
        %705 = vmatmul.bf16.gmra.mxu0 %v628
        %v706 = vpop.f32.mrf.mxu0
        %v707 = vadd.f32 0.0, %v706
        %v708 = vpop.f32.mrf.mxu0
        %v709 = vadd.f32 0.0, %v708
        %710 = vmatmul.bf16.gmra.mxu0 %v629
        %v711 = vpop.f32.mrf.mxu0
        %v712 = vadd.f32 0.0, %v711
        %v713 = vpop.f32.mrf.mxu0
        %v714 = vadd.f32 0.0, %v713
        %715 = vmatmul.bf16.gmra.mxu0 %v630
        %v716 = vpop.f32.mrf.mxu0
        %v717 = vadd.f32 0.0, %v716
        %v718 = vpop.f32.mrf.mxu0
        %v719 = vadd.f32 0.0, %v718
        %720 = vdwg.mxu0
        %v721 = vadd.f32 %v593, %v692
        %v722 = vadd.f32 %v594, %v694
        %v723 = vadd.f32 %v595, %v697
        %v724 = vadd.f32 %v596, %v699
        %v725 = vadd.f32 %v597, %v702
        %v726 = vadd.f32 %v598, %v704
        %v727 = vadd.f32 %v599, %v707
        %v728 = vadd.f32 %v600, %v709
        %v729 = vadd.f32 %v601, %v712
        %v730 = vadd.f32 %v602, %v714
        %v731 = vadd.f32 %v603, %v717
        %v732 = vadd.f32 %v604, %v719
        %s733 = scalar_lea.vmem [#allocation5], 64
        %v734 = vld [vmem:[%s733] sm:$0xf]
        %v735 = vld [vmem:[%s733 + $0x4] sm:$0xf]
        %v736 = vld [vmem:[%s733 + $0x8] sm:$0xf]
        %v737 = vld [vmem:[%s733 + $0xc] sm:$0xf]
        %v738 = vld [vmem:[%s733 + $0x10] sm:$0xf]
        %v739 = vld [vmem:[%s733 + $0x14] sm:$0xf]
        %v740 = vld [vmem:[%s733 + $0x18] sm:$0xf]
        %v741 = vld [vmem:[%s733 + $0x1c] sm:$0xf]
        %v742 = vld [vmem:[%s733 + $0x20] sm:$0xf]
        %v743 = vld [vmem:[%s733 + $0x24] sm:$0xf]
        %v744 = vld [vmem:[%s733 + $0x28] sm:$0xf]
        %v745 = vld [vmem:[%s733 + $0x2c] sm:$0xf]
        %v746 = vld [vmem:[%s733 + $0x30] sm:$0xf]
        %v747 = vld [vmem:[%s733 + $0x34] sm:$0xf]
        %v748 = vld [vmem:[%s733 + $0x38] sm:$0xf]
        %v749 = vld [vmem:[%s733 + $0x3c] sm:$0xf]
        %v750 = vpack.c.b16 %v491, %v491
        %vm751 = vsmask.f32 7424
        %v753 = vshrl.u32 %v360, 16
        %v755 = vshll.u32 %v360, 16
        %v757 = vrot.slane %v755, 1
        %v758 = vor.u32 %v753, %v757
        %v760 = vshll.u32 %v361, 16
        %v762 = vrot.slane %v760, 1
        %v763 = vsel %vm751, %v758, %v762
        %v764 = vshrl.u32 %v361, 16
        %v766 = vor.u32 %v764, %v762
        %v768 = vshll.u32 %v362, 16
        %v770 = vrot.slane %v768, 1
        %v771 = vsel %vm751, %v766, %v770
        %v772 = vshrl.u32 %v362, 16
        %v774 = vor.u32 %v772, %v770
        %v776 = vshll.u32 %v363, 16
        %v778 = vrot.slane %v776, 1
        %v779 = vsel %vm751, %v774, %v778
        %v780 = vshrl.u32 %v363, 16
        %v782 = vor.u32 %v780, %v778
        %v784 = vshll.u32 %v364, 16
        %v786 = vrot.slane %v784, 1
        %v787 = vsel %vm751, %v782, %v786
        %v788 = vshrl.u32 %v364, 16
        %v790 = vor.u32 %v788, %v786
        %v792 = vshll.u32 %v365, 16
        %v794 = vrot.slane %v792, 1
        %v795 = vsel %vm751, %v790, %v794
        %v796 = vshrl.u32 %v365, 16
        %v798 = vor.u32 %v796, %v794
        %v800 = vshll.u32 %v750, 16
        %v802 = vrot.slane %v800, 1
        %v803 = vsel %vm751, %v798, %v802
        %v826 = vunpack.c.l.b16 %v734
        %v827 = vunpack.c.l.b16 %v735
        %v828 = vunpack.c.l.b16 %v736
        %v829 = vunpack.c.l.b16 %v737
        %v830 = vunpack.c.l.b16 %v738
        %v831 = vunpack.c.l.b16 %v739
        %v832 = vunpack.c.l.b16 %v740
        %v833 = vunpack.c.l.b16 %v741
        %v834 = vunpack.c.l.b16 %v742
        %v835 = vunpack.c.l.b16 %v743
        %v836 = vunpack.c.l.b16 %v744
        %v837 = vunpack.c.l.b16 %v745
        %v838 = vunpack.c.l.b16 %v746
        %v839 = vunpack.c.l.b16 %v747
        %v840 = vunpack.c.l.b16 %v748
        %v841 = vunpack.c.l.b16 %v749
        %v842 = vpack.c.b16 %v827, %v826
        %v843 = vpack.c.b16 %v829, %v828
        %v844 = vpack.c.b16 %v831, %v830
        %v845 = vpack.c.b16 %v833, %v832
        %v846 = vpack.c.b16 %v835, %v834
        %v847 = vpack.c.b16 %v837, %v836
        %v848 = vpack.c.b16 %v839, %v838
        %v849 = vpack.c.b16 %v841, %v840
        %858 = vmatpush.bf16.msra.mxu0 %v849
        %859 = vmatpush.bf16.msra.mxu0 %v848
        %860 = vmatpush.bf16.msra.mxu0 %v847
        %861 = vmatpush.bf16.msra.mxu0 %v846
        %862 = vmatpush.bf16.msra.mxu0 %v845
        %863 = vmatpush.bf16.msra.mxu0 %v844
        %864 = vmatpush.bf16.msra.mxu0 %v843
        %865 = vmatpush.bf16.msra.mxu0 %v842
        %866 = vmatmul.bf16.gmra.mxu0 %v763
        %v867 = vpop.f32.mrf.mxu0
        %v868 = vadd.f32 0.0, %v867
        %v869 = vpop.f32.mrf.mxu0
        %v870 = vadd.f32 0.0, %v869
        %871 = vmatmul.bf16.gmra.mxu0 %v771
        %v872 = vpop.f32.mrf.mxu0
        %v873 = vadd.f32 0.0, %v872
        %v874 = vpop.f32.mrf.mxu0
        %v875 = vadd.f32 0.0, %v874
        %876 = vmatmul.bf16.gmra.mxu0 %v779
        %v877 = vpop.f32.mrf.mxu0
        %v878 = vadd.f32 0.0, %v877
        %v879 = vpop.f32.mrf.mxu0
        %v880 = vadd.f32 0.0, %v879
        %881 = vmatmul.bf16.gmra.mxu0 %v787
        %v882 = vpop.f32.mrf.mxu0
        %v883 = vadd.f32 0.0, %v882
        %v884 = vpop.f32.mrf.mxu0
        %v885 = vadd.f32 0.0, %v884
        %886 = vmatmul.bf16.gmra.mxu0 %v795
        %v887 = vpop.f32.mrf.mxu0
        %v888 = vadd.f32 0.0, %v887
        %v889 = vpop.f32.mrf.mxu0
        %v890 = vadd.f32 0.0, %v889
        %891 = vmatmul.bf16.gmra.mxu0 %v803
        %v892 = vpop.f32.mrf.mxu0
        %v893 = vadd.f32 0.0, %v892
        %v894 = vpop.f32.mrf.mxu0
        %v895 = vadd.f32 0.0, %v894
        %896 = vdwg.mxu0
        %v897 = vadd.f32 %v721, %v868
        %v898 = vadd.f32 %v722, %v870
        %v899 = vadd.f32 %v723, %v873
        %v900 = vadd.f32 %v724, %v875
        %v901 = vadd.f32 %v725, %v878
        %v902 = vadd.f32 %v726, %v880
        %v903 = vadd.f32 %v727, %v883
        %v904 = vadd.f32 %v728, %v885
        %v905 = vadd.f32 %v729, %v888
        %v906 = vadd.f32 %v730, %v890
        %v907 = vadd.f32 %v731, %v893
        %v908 = vadd.f32 %v732, %v895
        %s909 = scalar_lea.vmem [#allocation5], 256
        %v910 = vld [vmem:[%s909] sm:$0xf]
        %v911 = vld [vmem:[%s909 + $0x4] sm:$0xf]
        %v912 = vld [vmem:[%s909 + $0x8] sm:$0xf]
        %v913 = vld [vmem:[%s909 + $0xc] sm:$0xf]
        %v914 = vld [vmem:[%s909 + $0x10] sm:$0xf]
        %v915 = vld [vmem:[%s909 + $0x14] sm:$0xf]
        %v916 = vld [vmem:[%s909 + $0x18] sm:$0xf]
        %v917 = vld [vmem:[%s909 + $0x1c] sm:$0xf]
        %v918 = vld [vmem:[%s909 + $0x20] sm:$0xf]
        %v919 = vld [vmem:[%s909 + $0x24] sm:$0xf]
        %v920 = vld [vmem:[%s909 + $0x28] sm:$0xf]
        %v921 = vld [vmem:[%s909 + $0x2c] sm:$0xf]
        %v922 = vld [vmem:[%s909 + $0x30] sm:$0xf]
        %v923 = vld [vmem:[%s909 + $0x34] sm:$0xf]
        %v924 = vld [vmem:[%s909 + $0x38] sm:$0xf]
        %v925 = vld [vmem:[%s909 + $0x3c] sm:$0xf]
        %v926 = vpack.c.b16 %v625, %v625
        %v928 = vshrl.u32 %v494, 16
        %v930 = vshll.u32 %v494, 16
        %v932 = vrot.slane %v930, 1
        %v933 = vor.u32 %v928, %v932
        %v935 = vshll.u32 %v495, 16
        %v937 = vrot.slane %v935, 1
        %v938 = vsel %vm751, %v933, %v937
        %v939 = vshrl.u32 %v495, 16
        %v941 = vor.u32 %v939, %v937
        %v943 = vshll.u32 %v496, 16
        %v945 = vrot.slane %v943, 1
        %v946 = vsel %vm751, %v941, %v945
        %v947 = vshrl.u32 %v496, 16
        %v949 = vor.u32 %v947, %v945
        %v951 = vshll.u32 %v497, 16
        %v953 = vrot.slane %v951, 1
        %v954 = vsel %vm751, %v949, %v953
        %v955 = vshrl.u32 %v497, 16
        %v957 = vor.u32 %v955, %v953
        %v959 = vshll.u32 %v498, 16
        %v961 = vrot.slane %v959, 1
        %v962 = vsel %vm751, %v957, %v961
        %v963 = vshrl.u32 %v498, 16
        %v965 = vor.u32 %v963, %v961
        %v967 = vshll.u32 %v499, 16
        %v969 = vrot.slane %v967, 1
        %v970 = vsel %vm751, %v965, %v969
        %v971 = vshrl.u32 %v499, 16
        %v973 = vor.u32 %v971, %v969
        %v975 = vshll.u32 %v926, 16
        %v977 = vrot.slane %v975, 1
        %v978 = vsel %vm751, %v973, %v977
        %v1001 = vunpack.c.l.b16 %v910
        %v1002 = vunpack.c.l.b16 %v911
        %v1003 = vunpack.c.l.b16 %v912
        %v1004 = vunpack.c.l.b16 %v913
        %v1005 = vunpack.c.l.b16 %v914
        %v1006 = vunpack.c.l.b16 %v915
        %v1007 = vunpack.c.l.b16 %v916
        %v1008 = vunpack.c.l.b16 %v917
        %v1009 = vunpack.c.l.b16 %v918
        %v1010 = vunpack.c.l.b16 %v919
        %v1011 = vunpack.c.l.b16 %v920
        %v1012 = vunpack.c.l.b16 %v921
        %v1013 = vunpack.c.l.b16 %v922
        %v1014 = vunpack.c.l.b16 %v923
        %v1015 = vunpack.c.l.b16 %v924
        %v1016 = vunpack.c.l.b16 %v925
        %v1017 = vpack.c.b16 %v1002, %v1001
        %v1018 = vpack.c.b16 %v1004, %v1003
        %v1019 = vpack.c.b16 %v1006, %v1005
        %v1020 = vpack.c.b16 %v1008, %v1007
        %v1021 = vpack.c.b16 %v1010, %v1009
        %v1022 = vpack.c.b16 %v1012, %v1011
        %v1023 = vpack.c.b16 %v1014, %v1013
        %v1024 = vpack.c.b16 %v1016, %v1015
        %1033 = vmatpush.bf16.msra.mxu0 %v1024
        %1034 = vmatpush.bf16.msra.mxu0 %v1023
        %1035 = vmatpush.bf16.msra.mxu0 %v1022
        %1036 = vmatpush.bf16.msra.mxu0 %v1021
        %1037 = vmatpush.bf16.msra.mxu0 %v1020
        %1038 = vmatpush.bf16.msra.mxu0 %v1019
        %1039 = vmatpush.bf16.msra.mxu0 %v1018
        %1040 = vmatpush.bf16.msra.mxu0 %v1017
        %1041 = vmatmul.bf16.gmra.mxu0 %v938
        %v1042 = vpop.f32.mrf.mxu0
        %v1043 = vadd.f32 0.0, %v1042
        %v1044 = vpop.f32.mrf.mxu0
        %v1045 = vadd.f32 0.0, %v1044
        %1046 = vmatmul.bf16.gmra.mxu0 %v946
        %v1047 = vpop.f32.mrf.mxu0
        %v1048 = vadd.f32 0.0, %v1047
        %v1049 = vpop.f32.mrf.mxu0
        %v1050 = vadd.f32 0.0, %v1049
        %1051 = vmatmul.bf16.gmra.mxu0 %v954
        %v1052 = vpop.f32.mrf.mxu0
        %v1053 = vadd.f32 0.0, %v1052
        %v1054 = vpop.f32.mrf.mxu0
        %v1055 = vadd.f32 0.0, %v1054
        %1056 = vmatmul.bf16.gmra.mxu0 %v962
        %v1057 = vpop.f32.mrf.mxu0
        %v1058 = vadd.f32 0.0, %v1057
        %v1059 = vpop.f32.mrf.mxu0
        %v1060 = vadd.f32 0.0, %v1059
        %1061 = vmatmul.bf16.gmra.mxu0 %v970
        %v1062 = vpop.f32.mrf.mxu0
        %v1063 = vadd.f32 0.0, %v1062
        %v1064 = vpop.f32.mrf.mxu0
        %v1065 = vadd.f32 0.0, %v1064
        %1066 = vmatmul.bf16.gmra.mxu0 %v978
        %v1067 = vpop.f32.mrf.mxu0
        %v1068 = vadd.f32 0.0, %v1067
        %v1069 = vpop.f32.mrf.mxu0
        %v1070 = vadd.f32 0.0, %v1069
        %1071 = vdwg.mxu0
        %v1072 = vadd.f32 %v897, %v1043
        %v1073 = vadd.f32 %v898, %v1045
        %v1074 = vadd.f32 %v899, %v1048
        %v1075 = vadd.f32 %v900, %v1050
        %v1076 = vadd.f32 %v901, %v1053
        %v1077 = vadd.f32 %v902, %v1055
        %v1078 = vadd.f32 %v903, %v1058
        %v1079 = vadd.f32 %v904, %v1060
        %v1080 = vadd.f32 %v905, %v1063
        %v1081 = vadd.f32 %v906, %v1065
        %v1082 = vadd.f32 %v907, %v1068
        %v1083 = vadd.f32 %v908, %v1070
        %s1084 = scalar_lea.vmem [#allocation5], 448
        %v1085 = vld [vmem:[%s1084] sm:$0xf]
        %v1086 = vld [vmem:[%s1084 + $0x4] sm:$0xf]
        %v1087 = vld [vmem:[%s1084 + $0x8] sm:$0xf]
        %v1088 = vld [vmem:[%s1084 + $0xc] sm:$0xf]
        %v1089 = vld [vmem:[%s1084 + $0x10] sm:$0xf]
        %v1090 = vld [vmem:[%s1084 + $0x14] sm:$0xf]
        %v1091 = vld [vmem:[%s1084 + $0x18] sm:$0xf]
        %v1092 = vld [vmem:[%s1084 + $0x1c] sm:$0xf]
        %v1093 = vld [vmem:[%s1084 + $0x20] sm:$0xf]
        %v1094 = vld [vmem:[%s1084 + $0x24] sm:$0xf]
        %v1095 = vld [vmem:[%s1084 + $0x28] sm:$0xf]
        %v1096 = vld [vmem:[%s1084 + $0x2c] sm:$0xf]
        %v1097 = vld [vmem:[%s1084 + $0x30] sm:$0xf]
        %v1098 = vld [vmem:[%s1084 + $0x34] sm:$0xf]
        %v1099 = vld [vmem:[%s1084 + $0x38] sm:$0xf]
        %v1100 = vld [vmem:[%s1084 + $0x3c] sm:$0xf]
        %v1102 = vunpack.c.l.b16 %v315
        %v1103 = vpack.c.b16 %v1102, %v1102
        %v1105 = vshll.u32 %v628, 16
        %v1107 = vrot.slane %v1105, 1
        %v1108 = vsel %vm751, %v798, %v1107
        %v1109 = vshrl.u32 %v628, 16
        %v1111 = vor.u32 %v1109, %v1107
        %v1113 = vshll.u32 %v629, 16
        %v1115 = vrot.slane %v1113, 1
        %v1116 = vsel %vm751, %v1111, %v1115
        %v1117 = vshrl.u32 %v629, 16
        %v1119 = vor.u32 %v1117, %v1115
        %v1121 = vshll.u32 %v630, 16
        %v1123 = vrot.slane %v1121, 1
        %v1124 = vsel %vm751, %v1119, %v1123
        %v1125 = vshrl.u32 %v630, 16
        %v1127 = vor.u32 %v1125, %v1123
        %v1129 = vshll.u32 %v1103, 16
        %v1131 = vrot.slane %v1129, 1
        %v1132 = vsel %vm751, %v1127, %v1131
        %v1153 = vunpack.c.l.b16 %v1085
        %v1154 = vunpack.c.l.b16 %v1086
        %v1155 = vunpack.c.l.b16 %v1087
        %v1156 = vunpack.c.l.b16 %v1088
        %v1157 = vunpack.c.l.b16 %v1089
        %v1158 = vunpack.c.l.b16 %v1090
        %v1159 = vunpack.c.l.b16 %v1091
        %v1160 = vunpack.c.l.b16 %v1092
        %v1161 = vunpack.c.l.b16 %v1093
        %v1162 = vunpack.c.l.b16 %v1094
        %v1163 = vunpack.c.l.b16 %v1095
        %v1164 = vunpack.c.l.b16 %v1096
        %v1165 = vunpack.c.l.b16 %v1097
        %v1166 = vunpack.c.l.b16 %v1098
        %v1167 = vunpack.c.l.b16 %v1099
        %v1168 = vunpack.c.l.b16 %v1100
        %v1169 = vpack.c.b16 %v1154, %v1153
        %v1170 = vpack.c.b16 %v1156, %v1155
        %v1171 = vpack.c.b16 %v1158, %v1157
        %v1172 = vpack.c.b16 %v1160, %v1159
        %v1173 = vpack.c.b16 %v1162, %v1161
        %v1174 = vpack.c.b16 %v1164, %v1163
        %v1175 = vpack.c.b16 %v1166, %v1165
        %v1176 = vpack.c.b16 %v1168, %v1167
        %1185 = vmatpush.bf16.msra.mxu0 %v1176
        %1186 = vmatpush.bf16.msra.mxu0 %v1175
        %1187 = vmatpush.bf16.msra.mxu0 %v1174
        %1188 = vmatpush.bf16.msra.mxu0 %v1173
        %1189 = vmatpush.bf16.msra.mxu0 %v1172
        %1190 = vmatpush.bf16.msra.mxu0 %v1171
        %1191 = vmatpush.bf16.msra.mxu0 %v1170
        %1192 = vmatpush.bf16.msra.mxu0 %v1169
        %1193 = vmatmul.bf16.gmra.mxu0 %v787
        %v1194 = vpop.f32.mrf.mxu0
        %v1195 = vadd.f32 0.0, %v1194
        %v1196 = vpop.f32.mrf.mxu0
        %v1197 = vadd.f32 0.0, %v1196
        %1198 = vmatmul.bf16.gmra.mxu0 %v795
        %v1199 = vpop.f32.mrf.mxu0
        %v1200 = vadd.f32 0.0, %v1199
        %v1201 = vpop.f32.mrf.mxu0
        %v1202 = vadd.f32 0.0, %v1201
        %1203 = vmatmul.bf16.gmra.mxu0 %v1108
        %v1204 = vpop.f32.mrf.mxu0
        %v1205 = vadd.f32 0.0, %v1204
        %v1206 = vpop.f32.mrf.mxu0
        %v1207 = vadd.f32 0.0, %v1206
        %1208 = vmatmul.bf16.gmra.mxu0 %v1116
        %v1209 = vpop.f32.mrf.mxu0
        %v1210 = vadd.f32 0.0, %v1209
        %v1211 = vpop.f32.mrf.mxu0
        %v1212 = vadd.f32 0.0, %v1211
        %1213 = vmatmul.bf16.gmra.mxu0 %v1124
        %v1214 = vpop.f32.mrf.mxu0
        %v1215 = vadd.f32 0.0, %v1214
        %v1216 = vpop.f32.mrf.mxu0
        %v1217 = vadd.f32 0.0, %v1216
        %1218 = vmatmul.bf16.gmra.mxu0 %v1132
        %v1219 = vpop.f32.mrf.mxu0
        %v1220 = vadd.f32 0.0, %v1219
        %v1221 = vpop.f32.mrf.mxu0
        %v1222 = vadd.f32 0.0, %v1221
        %1223 = vdwg.mxu0
        %v1224 = vadd.f32 %v1072, %v1195
        %v1225 = vadd.f32 %v1073, %v1197
        %v1226 = vadd.f32 %v1074, %v1200
        %v1227 = vadd.f32 %v1075, %v1202
        %v1228 = vadd.f32 %v1076, %v1205
        %v1229 = vadd.f32 %v1077, %v1207
        %v1230 = vadd.f32 %v1078, %v1210
        %v1231 = vadd.f32 %v1079, %v1212
        %v1232 = vadd.f32 %v1080, %v1215
        %v1233 = vadd.f32 %v1081, %v1217
        %v1234 = vadd.f32 %v1082, %v1220
        %v1235 = vadd.f32 %v1083, %v1222
        %s1236 = scalar_lea.vmem [#allocation5], 128
        %v1237 = vld [vmem:[%s1236] sm:$0xf]
        %v1238 = vld [vmem:[%s1236 + $0x4] sm:$0xf]
        %v1239 = vld [vmem:[%s1236 + $0x8] sm:$0xf]
        %v1240 = vld [vmem:[%s1236 + $0xc] sm:$0xf]
        %v1241 = vld [vmem:[%s1236 + $0x10] sm:$0xf]
        %v1242 = vld [vmem:[%s1236 + $0x14] sm:$0xf]
        %v1243 = vld [vmem:[%s1236 + $0x18] sm:$0xf]
        %v1244 = vld [vmem:[%s1236 + $0x1c] sm:$0xf]
        %v1245 = vld [vmem:[%s1236 + $0x20] sm:$0xf]
        %v1246 = vld [vmem:[%s1236 + $0x24] sm:$0xf]
        %v1247 = vld [vmem:[%s1236 + $0x28] sm:$0xf]
        %v1248 = vld [vmem:[%s1236 + $0x2c] sm:$0xf]
        %v1249 = vld [vmem:[%s1236 + $0x30] sm:$0xf]
        %v1250 = vld [vmem:[%s1236 + $0x34] sm:$0xf]
        %v1251 = vld [vmem:[%s1236 + $0x38] sm:$0xf]
        %v1252 = vld [vmem:[%s1236 + $0x3c] sm:$0xf]
        %vm1253 = vcmask 1046528
        %v1254 = vrot.slane %v360, 1
        %v1255 = vrot.slane %v361, 1
        %v1256 = vsel %vm1253, %v1254, %v1255
        %v1257 = vrot.slane %v362, 1
        %v1258 = vsel %vm1253, %v1255, %v1257
        %v1259 = vrot.slane %v363, 1
        %v1260 = vsel %vm1253, %v1257, %v1259
        %v1261 = vrot.slane %v364, 1
        %v1262 = vsel %vm1253, %v1259, %v1261
        %v1263 = vrot.slane %v365, 1
        %v1264 = vsel %vm1253, %v1261, %v1263
        %v1265 = vrot.slane %v750, 1
        %v1266 = vsel %vm1253, %v1263, %v1265
        %v1289 = vunpack.c.l.b16 %v1237
        %v1290 = vunpack.c.l.b16 %v1238
        %v1291 = vunpack.c.l.b16 %v1239
        %v1292 = vunpack.c.l.b16 %v1240
        %v1293 = vunpack.c.l.b16 %v1241
        %v1294 = vunpack.c.l.b16 %v1242
        %v1295 = vunpack.c.l.b16 %v1243
        %v1296 = vunpack.c.l.b16 %v1244
        %v1297 = vunpack.c.l.b16 %v1245
        %v1298 = vunpack.c.l.b16 %v1246
        %v1299 = vunpack.c.l.b16 %v1247
        %v1300 = vunpack.c.l.b16 %v1248
        %v1301 = vunpack.c.l.b16 %v1249
        %v1302 = vunpack.c.l.b16 %v1250
        %v1303 = vunpack.c.l.b16 %v1251
        %v1304 = vunpack.c.l.b16 %v1252
        %v1305 = vpack.c.b16 %v1290, %v1289
        %v1306 = vpack.c.b16 %v1292, %v1291
        %v1307 = vpack.c.b16 %v1294, %v1293
        %v1308 = vpack.c.b16 %v1296, %v1295
        %v1309 = vpack.c.b16 %v1298, %v1297
        %v1310 = vpack.c.b16 %v1300, %v1299
        %v1311 = vpack.c.b16 %v1302, %v1301
        %v1312 = vpack.c.b16 %v1304, %v1303
        %1321 = vmatpush.bf16.msra.mxu0 %v1312
        %1322 = vmatpush.bf16.msra.mxu0 %v1311
        %1323 = vmatpush.bf16.msra.mxu0 %v1310
        %1324 = vmatpush.bf16.msra.mxu0 %v1309
        %1325 = vmatpush.bf16.msra.mxu0 %v1308
        %1326 = vmatpush.bf16.msra.mxu0 %v1307
        %1327 = vmatpush.bf16.msra.mxu0 %v1306
        %1328 = vmatpush.bf16.msra.mxu0 %v1305
        %1329 = vmatmul.bf16.gmra.mxu0 %v1256
        %v1330 = vpop.f32.mrf.mxu0
        %v1331 = vadd.f32 0.0, %v1330
        %v1332 = vpop.f32.mrf.mxu0
        %v1333 = vadd.f32 0.0, %v1332
        %1334 = vmatmul.bf16.gmra.mxu0 %v1258
        %v1335 = vpop.f32.mrf.mxu0
        %v1336 = vadd.f32 0.0, %v1335
        %v1337 = vpop.f32.mrf.mxu0
        %v1338 = vadd.f32 0.0, %v1337
        %1339 = vmatmul.bf16.gmra.mxu0 %v1260
        %v1340 = vpop.f32.mrf.mxu0
        %v1341 = vadd.f32 0.0, %v1340
        %v1342 = vpop.f32.mrf.mxu0
        %v1343 = vadd.f32 0.0, %v1342
        %1344 = vmatmul.bf16.gmra.mxu0 %v1262
        %v1345 = vpop.f32.mrf.mxu0
        %v1346 = vadd.f32 0.0, %v1345
        %v1347 = vpop.f32.mrf.mxu0
        %v1348 = vadd.f32 0.0, %v1347
        %1349 = vmatmul.bf16.gmra.mxu0 %v1264
        %v1350 = vpop.f32.mrf.mxu0
        %v1351 = vadd.f32 0.0, %v1350
        %v1352 = vpop.f32.mrf.mxu0
        %v1353 = vadd.f32 0.0, %v1352
        %1354 = vmatmul.bf16.gmra.mxu0 %v1266
        %v1355 = vpop.f32.mrf.mxu0
        %v1356 = vadd.f32 0.0, %v1355
        %v1357 = vpop.f32.mrf.mxu0
        %v1358 = vadd.f32 0.0, %v1357
        %1359 = vdwg.mxu0
        %v1360 = vadd.f32 %v1224, %v1331
        %v1361 = vadd.f32 %v1225, %v1333
        %v1362 = vadd.f32 %v1226, %v1336
        %v1363 = vadd.f32 %v1227, %v1338
        %v1364 = vadd.f32 %v1228, %v1341
        %v1365 = vadd.f32 %v1229, %v1343
        %v1366 = vadd.f32 %v1230, %v1346
        %v1367 = vadd.f32 %v1231, %v1348
        %v1368 = vadd.f32 %v1232, %v1351
        %v1369 = vadd.f32 %v1233, %v1353
        %v1370 = vadd.f32 %v1234, %v1356
        %v1371 = vadd.f32 %v1235, %v1358
        %s1372 = scalar_lea.vmem [#allocation5], 320
        %v1373 = vld [vmem:[%s1372] sm:$0xf]
        %v1374 = vld [vmem:[%s1372 + $0x4] sm:$0xf]
        %v1375 = vld [vmem:[%s1372 + $0x8] sm:$0xf]
        %v1376 = vld [vmem:[%s1372 + $0xc] sm:$0xf]
        %v1377 = vld [vmem:[%s1372 + $0x10] sm:$0xf]
        %v1378 = vld [vmem:[%s1372 + $0x14] sm:$0xf]
        %v1379 = vld [vmem:[%s1372 + $0x18] sm:$0xf]
        %v1380 = vld [vmem:[%s1372 + $0x1c] sm:$0xf]
        %v1381 = vld [vmem:[%s1372 + $0x20] sm:$0xf]
        %v1382 = vld [vmem:[%s1372 + $0x24] sm:$0xf]
        %v1383 = vld [vmem:[%s1372 + $0x28] sm:$0xf]
        %v1384 = vld [vmem:[%s1372 + $0x2c] sm:$0xf]
        %v1385 = vld [vmem:[%s1372 + $0x30] sm:$0xf]
        %v1386 = vld [vmem:[%s1372 + $0x34] sm:$0xf]
        %v1387 = vld [vmem:[%s1372 + $0x38] sm:$0xf]
        %v1388 = vld [vmem:[%s1372 + $0x3c] sm:$0xf]
        %v1389 = vrot.slane %v494, 1
        %v1390 = vrot.slane %v495, 1
        %v1391 = vsel %vm1253, %v1389, %v1390
        %v1392 = vrot.slane %v496, 1
        %v1393 = vsel %vm1253, %v1390, %v1392
        %v1394 = vrot.slane %v497, 1
        %v1395 = vsel %vm1253, %v1392, %v1394
        %v1396 = vrot.slane %v498, 1
        %v1397 = vsel %vm1253, %v1394, %v1396
        %v1398 = vrot.slane %v499, 1
        %v1399 = vsel %vm1253, %v1396, %v1398
        %v1400 = vrot.slane %v926, 1
        %v1401 = vsel %vm1253, %v1398, %v1400
        %v1424 = vunpack.c.l.b16 %v1373
        %v1425 = vunpack.c.l.b16 %v1374
        %v1426 = vunpack.c.l.b16 %v1375
        %v1427 = vunpack.c.l.b16 %v1376
        %v1428 = vunpack.c.l.b16 %v1377
        %v1429 = vunpack.c.l.b16 %v1378
        %v1430 = vunpack.c.l.b16 %v1379
        %v1431 = vunpack.c.l.b16 %v1380
        %v1432 = vunpack.c.l.b16 %v1381
        %v1433 = vunpack.c.l.b16 %v1382
        %v1434 = vunpack.c.l.b16 %v1383
        %v1435 = vunpack.c.l.b16 %v1384
        %v1436 = vunpack.c.l.b16 %v1385
        %v1437 = vunpack.c.l.b16 %v1386
        %v1438 = vunpack.c.l.b16 %v1387
        %v1439 = vunpack.c.l.b16 %v1388
        %v1440 = vpack.c.b16 %v1425, %v1424
        %v1441 = vpack.c.b16 %v1427, %v1426
        %v1442 = vpack.c.b16 %v1429, %v1428
        %v1443 = vpack.c.b16 %v1431, %v1430
        %v1444 = vpack.c.b16 %v1433, %v1432
        %v1445 = vpack.c.b16 %v1435, %v1434
        %v1446 = vpack.c.b16 %v1437, %v1436
        %v1447 = vpack.c.b16 %v1439, %v1438
        %1456 = vmatpush.bf16.msra.mxu0 %v1447
        %1457 = vmatpush.bf16.msra.mxu0 %v1446
        %1458 = vmatpush.bf16.msra.mxu0 %v1445
        %1459 = vmatpush.bf16.msra.mxu0 %v1444
        %1460 = vmatpush.bf16.msra.mxu0 %v1443
        %1461 = vmatpush.bf16.msra.mxu0 %v1442
        %1462 = vmatpush.bf16.msra.mxu0 %v1441
        %1463 = vmatpush.bf16.msra.mxu0 %v1440
        %1464 = vmatmul.bf16.gmra.mxu0 %v1391
        %v1465 = vpop.f32.mrf.mxu0
        %v1466 = vadd.f32 0.0, %v1465
        %v1467 = vpop.f32.mrf.mxu0
        %v1468 = vadd.f32 0.0, %v1467
        %1469 = vmatmul.bf16.gmra.mxu0 %v1393
        %v1470 = vpop.f32.mrf.mxu0
        %v1471 = vadd.f32 0.0, %v1470
        %v1472 = vpop.f32.mrf.mxu0
        %v1473 = vadd.f32 0.0, %v1472
        %1474 = vmatmul.bf16.gmra.mxu0 %v1395
        %v1475 = vpop.f32.mrf.mxu0
        %v1476 = vadd.f32 0.0, %v1475
        %v1477 = vpop.f32.mrf.mxu0
        %v1478 = vadd.f32 0.0, %v1477
        %1479 = vmatmul.bf16.gmra.mxu0 %v1397
        %v1480 = vpop.f32.mrf.mxu0
        %v1481 = vadd.f32 0.0, %v1480
        %v1482 = vpop.f32.mrf.mxu0
        %v1483 = vadd.f32 0.0, %v1482
        %1484 = vmatmul.bf16.gmra.mxu0 %v1399
        %v1485 = vpop.f32.mrf.mxu0
        %v1486 = vadd.f32 0.0, %v1485
        %v1487 = vpop.f32.mrf.mxu0
        %v1488 = vadd.f32 0.0, %v1487
        %1489 = vmatmul.bf16.gmra.mxu0 %v1401
        %v1490 = vpop.f32.mrf.mxu0
        %v1491 = vadd.f32 0.0, %v1490
        %v1492 = vpop.f32.mrf.mxu0
        %v1493 = vadd.f32 0.0, %v1492
        %1494 = vdwg.mxu0
        %v1495 = vadd.f32 %v1360, %v1466
        %v1496 = vadd.f32 %v1361, %v1468
        %v1497 = vadd.f32 %v1362, %v1471
        %v1498 = vadd.f32 %v1363, %v1473
        %v1499 = vadd.f32 %v1364, %v1476
        %v1500 = vadd.f32 %v1365, %v1478
        %v1501 = vadd.f32 %v1366, %v1481
        %v1502 = vadd.f32 %v1367, %v1483
        %v1503 = vadd.f32 %v1368, %v1486
        %v1504 = vadd.f32 %v1369, %v1488
        %v1505 = vadd.f32 %v1370, %v1491
        %v1506 = vadd.f32 %v1371, %v1493
        %s1507 = scalar_lea.vmem [#allocation5], 512
        %v1508 = vld [vmem:[%s1507] sm:$0xf]
        %v1509 = vld [vmem:[%s1507 + $0x4] sm:$0xf]
        %v1510 = vld [vmem:[%s1507 + $0x8] sm:$0xf]
        %v1511 = vld [vmem:[%s1507 + $0xc] sm:$0xf]
        %v1512 = vld [vmem:[%s1507 + $0x10] sm:$0xf]
        %v1513 = vld [vmem:[%s1507 + $0x14] sm:$0xf]
        %v1514 = vld [vmem:[%s1507 + $0x18] sm:$0xf]
        %v1515 = vld [vmem:[%s1507 + $0x1c] sm:$0xf]
        %v1516 = vld [vmem:[%s1507 + $0x20] sm:$0xf]
        %v1517 = vld [vmem:[%s1507 + $0x24] sm:$0xf]
        %v1518 = vld [vmem:[%s1507 + $0x28] sm:$0xf]
        %v1519 = vld [vmem:[%s1507 + $0x2c] sm:$0xf]
        %v1520 = vld [vmem:[%s1507 + $0x30] sm:$0xf]
        %v1521 = vld [vmem:[%s1507 + $0x34] sm:$0xf]
        %v1522 = vld [vmem:[%s1507 + $0x38] sm:$0xf]
        %v1523 = vld [vmem:[%s1507 + $0x3c] sm:$0xf]
        %v1524 = vrot.slane %v628, 1
        %v1525 = vsel %vm1253, %v1263, %v1524
        %v1526 = vrot.slane %v629, 1
        %v1527 = vsel %vm1253, %v1524, %v1526
        %v1528 = vrot.slane %v630, 1
        %v1529 = vsel %vm1253, %v1526, %v1528
        %v1530 = vrot.slane %v1103, 1
        %v1531 = vsel %vm1253, %v1528, %v1530
        %v1552 = vunpack.c.l.b16 %v1508
        %v1553 = vunpack.c.l.b16 %v1509
        %v1554 = vunpack.c.l.b16 %v1510
        %v1555 = vunpack.c.l.b16 %v1511
        %v1556 = vunpack.c.l.b16 %v1512
        %v1557 = vunpack.c.l.b16 %v1513
        %v1558 = vunpack.c.l.b16 %v1514
        %v1559 = vunpack.c.l.b16 %v1515
        %v1560 = vunpack.c.l.b16 %v1516
        %v1561 = vunpack.c.l.b16 %v1517
        %v1562 = vunpack.c.l.b16 %v1518
        %v1563 = vunpack.c.l.b16 %v1519
        %v1564 = vunpack.c.l.b16 %v1520
        %v1565 = vunpack.c.l.b16 %v1521
        %v1566 = vunpack.c.l.b16 %v1522
        %v1567 = vunpack.c.l.b16 %v1523
        %v1568 = vpack.c.b16 %v1553, %v1552
        %v1569 = vpack.c.b16 %v1555, %v1554
        %v1570 = vpack.c.b16 %v1557, %v1556
        %v1571 = vpack.c.b16 %v1559, %v1558
        %v1572 = vpack.c.b16 %v1561, %v1560
        %v1573 = vpack.c.b16 %v1563, %v1562
        %v1574 = vpack.c.b16 %v1565, %v1564
        %v1575 = vpack.c.b16 %v1567, %v1566
        %1584 = vmatpush.bf16.msra.mxu0 %v1575
        %1585 = vmatpush.bf16.msra.mxu0 %v1574
        %1586 = vmatpush.bf16.msra.mxu0 %v1573
        %1587 = vmatpush.bf16.msra.mxu0 %v1572
        %1588 = vmatpush.bf16.msra.mxu0 %v1571
        %1589 = vmatpush.bf16.msra.mxu0 %v1570
        %1590 = vmatpush.bf16.msra.mxu0 %v1569
        %1591 = vmatpush.bf16.msra.mxu0 %v1568
        %1592 = vmatmul.bf16.gmra.mxu0 %v1262
        %v1593 = vpop.f32.mrf.mxu0
        %v1594 = vadd.f32 0.0, %v1593
        %v1595 = vpop.f32.mrf.mxu0
        %v1596 = vadd.f32 0.0, %v1595
        %1597 = vmatmul.bf16.gmra.mxu0 %v1264
        %v1598 = vpop.f32.mrf.mxu0
        %v1599 = vadd.f32 0.0, %v1598
        %v1600 = vpop.f32.mrf.mxu0
        %v1601 = vadd.f32 0.0, %v1600
        %1602 = vmatmul.bf16.gmra.mxu0 %v1525
        %v1603 = vpop.f32.mrf.mxu0
        %v1604 = vadd.f32 0.0, %v1603
        %v1605 = vpop.f32.mrf.mxu0
        %v1606 = vadd.f32 0.0, %v1605
        %1607 = vmatmul.bf16.gmra.mxu0 %v1527
        %v1608 = vpop.f32.mrf.mxu0
        %v1609 = vadd.f32 0.0, %v1608
        %v1610 = vpop.f32.mrf.mxu0
        %v1611 = vadd.f32 0.0, %v1610
        %1612 = vmatmul.bf16.gmra.mxu0 %v1529
        %v1613 = vpop.f32.mrf.mxu0
        %v1614 = vadd.f32 0.0, %v1613
        %v1615 = vpop.f32.mrf.mxu0
        %v1616 = vadd.f32 0.0, %v1615
        %1617 = vmatmul.bf16.gmra.mxu0 %v1531
        %v1618 = vpop.f32.mrf.mxu0
        %v1619 = vadd.f32 0.0, %v1618
        %v1620 = vpop.f32.mrf.mxu0
        %v1621 = vadd.f32 0.0, %v1620
        %1622 = vdwg.mxu0
        %v1623 = vadd.f32 %v1495, %v1594
        %v1624 = vadd.f32 %v1496, %v1596
        %v1625 = vadd.f32 %v1497, %v1599
        %v1626 = vadd.f32 %v1498, %v1601
        %v1627 = vadd.f32 %v1499, %v1604
        %v1628 = vadd.f32 %v1500, %v1606
        %v1629 = vadd.f32 %v1501, %v1609
        %v1630 = vadd.f32 %v1502, %v1611
        %v1631 = vadd.f32 %v1503, %v1614
        %v1632 = vadd.f32 %v1504, %v1616
        %v1633 = vadd.f32 %v1505, %v1619
        %v1634 = vadd.f32 %v1506, %v1621
        %1635 = vst [vmem:[%s231] sm:$0xff] %v1623
        %1636 = vst [vmem:[%s231 + $0x8] sm:$0xff] %v1624
        %1637 = vst [vmem:[%s231 + $0x10] sm:$0xff] %v1625
        %1638 = vst [vmem:[%s231 + $0x18] sm:$0xff] %v1626
        %1639 = vst [vmem:[%s231 + $0x20] sm:$0xff] %v1627
        %1640 = vst [vmem:[%s231 + $0x28] sm:$0xff] %v1628
        %1641 = vst [vmem:[%s231 + $0x30] sm:$0xff] %v1629
        %1642 = vst [vmem:[%s231 + $0x38] sm:$0xff] %v1630
        %1643 = vst [vmem:[%s231 + $0x40] sm:$0xff] %v1631
        %1644 = vst [vmem:[%s231 + $0x48] sm:$0xff] %v1632
        %1645 = vst [vmem:[%s231 + $0x50] sm:$0xff] %v1633
        %1646 = vst [vmem:[%s231 + $0x58] sm:$0xff] %v1634
        %s1647 = sand.u32 %s128, 1
        %s1648 = scalar_lea.sflag [#allocation4], %s1647
        %s1649 = sand.u32 %s128, 1
        %s1650 = smul.addr %s1649, 96
        %s1651 = scalar_lea.vmem [#allocation7], %s1650
        // Predicated region
        $region41: #{tpu_custom_call.1} parent=31 // pred_check
          %p1652 = pneg %p138
        $region42: #{tpu_custom_call.1} parent=31 // pred_check_branch
          %1654 = sbr.rel (%p1652) target = $region44
        $region43: #{tpu_custom_call.1} parent=31 // pred_region
          %s1655 = smul.u32 4, %s26
          %1657 = vsyncadd %s1648, 0
          %s1658 = smul.addr %s1655, 3
          %s1659 = sadd.s32 %s25, %s1658
          %s1660 = smul.addr %s24, 48
          %s1661 = sadd.s32 %s1659, %s1660
          %s1662 = smul.addr %s1661, 8
          %s1663 = scalar_lea.hbm %s3, %s1662
          %s1664 = sshll.u32 %s1651, 4
          %s1665 = int_to_ptr.vmem [resolvable:$true] %s1664
          %s1666 = sshll.u32 %s1663, 4
          %s1667 = int_to_ptr.hbm [resolvable:$true] %s1666
          %1672 = dma.vmem_to_hbm [thread:$0]  %s1665, 1536, %s1667, %s1648, 128, 128, 8
        $region44: #{tpu_custom_call.1} parent=31 // pred_fallthru
          _
      $region32: #{tpu_custom_call.1} parent=5 // pred_fallthru
        _
      %p1673 = scmp.le.s32.totalorder 2, %s14
      // Predicated region
      $region45: #{tpu_custom_call.1} parent=5 // pred_check
        %p1674 = pneg %p1673
      $region46: #{tpu_custom_call.1} parent=5 // pred_check_branch
        %1676 = sbr.rel (%p1674) target = $region48
      $region47: #{tpu_custom_call.1} parent=5 // pred_region
        %s1677 = ssub.s32 %s14, 2
        // Predicated region
        $region49: #{tpu_custom_call.1} parent=47 // pred_check
          %p1678 = pneg %p144
        $region50: #{tpu_custom_call.1} parent=47 // pred_check_branch
          %1680 = sbr.rel (%p1678) target = $region52
        $region51: #{tpu_custom_call.1} parent=47 // pred_region
          %s1681 = sand.u32 %s129, 1
          %s1682 = scalar_lea.sflag [#allocation4], %s1681
          %s1683 = sand.u32 %s129, 1
          %s1684 = smul.addr %s1683, 96
          %s1685 = scalar_lea.vmem [#allocation7], %s1684
          %1687 = dma.done %s1682, 1536
        $region52: #{tpu_custom_call.1} parent=47 // pred_fallthru
          _
      $region48: #{tpu_custom_call.1} parent=5 // pred_fallthru
        _
    $region6: #{tpu_custom_call.1} parent=1 // loop_footer
      %s18 = sadd.s32 1, %s14
    $region7: #{tpu_custom_call.1} parent=1 // loop_footer_branch
      %13 = sbr.rel target = $region3
    $region8: #{tpu_custom_call.1} parent=1 // loop_exit
      _
    %1688 = vsyncpa [#allocation3], 1
    %s1689 = scalar_lea.sflag [#allocation3], 1
    %1690 = vsyncpa %s1689, 1
    %1691 = vsyncpa [#allocation6], 1
    %1692 = vsyncpa [#allocation4], 1
    %s1693 = scalar_lea.sflag [#allocation4], 1
    %1694 = vsyncpa %s1693, 1

</llo_original>
